<compile_context>
chip_gen: v5e
topology: v5e:2x2
jax: 0.10.0
libtpu: 0.0.40
codegen_flags: <defaults>
</compile_context>

<pallas_src>
import math

import jax
import jax.numpy as jnp
import numpy as np
from jax import lax
from jax.experimental import pallas as pl
from jax.experimental.pallas import tpu as pltpu

# ---- static model config (HGTConv hyper-params) --------------------------------
IN_DIM = 32
OUT_DIM = 32          # skip connection requires in_dim == out_dim
NUM_TYPES = 2
NUM_RELATIONS = 2
N_HEADS = 4
D_K = OUT_DIM // N_HEADS
SQRT_DK = math.sqrt(D_K)
MAX_LEN = 240
LN_EPS = 1e-5

assert NUM_TYPES == 2 and NUM_RELATIONS == 2   # binary jnp.where selects below

# packed weight-slab column offsets (rows = 2*IN_DIM, dtype bf16, 128-aligned starts)
OFF_KVQ = 0                      # [k0|v0|k1|v1|q0|q1]            width 6*OUT = 192
OFF_REL = 256                    # [att0|att1|msg0|msg1] blkdiag  width 4*OUT = 128
OFF_HEAD = 384                   # head-sum+expand constant        width OUT
OFF_A = 448                      # [wa0|wa1]                       width 2*OUT
W_COLS = 512

# misc constant slab (f32)
MISC_COLS = 6 * OUT_DIM          # 192
ROW_BIAS = 0                     # [bk0|bv0|bk1|bv1|bq0|bq1]
ROW_BA = 1                       # [ba0|ba1]
ROW_GAMMA = 2
ROW_BETA = 3
ROW_PRI = 4                      # rows 4..4+R-1: rel_pri[r] head-expanded / sqrt_dk
ROW_ALPHA = 6                    # [sigmoid(skip0)*O | sigmoid(skip1)*O]
MISC_ROWS = 8


def _round_up(x, m):
    return (x + m - 1) // m * m


# =================================================================================
# Parameter construction (deterministic, synthetic)
# =================================================================================
def make_rte_table(n_hid, max_len=MAX_LEN):
    position = jnp.arange(0.0, max_len, dtype=jnp.float32)[:, None]
    ar = jnp.arange(0.0, n_hid * 2, 2.0, dtype=jnp.float32)
    div_term = 1.0 / (jnp.power(jnp.float32(10000.0), ar) / n_hid / 2.0)
    s = jnp.sin(position * div_term) / math.sqrt(n_hid)
    c = jnp.cos(position * div_term) / math.sqrt(n_hid)
    emb = jnp.zeros((max_len, n_hid * 2), jnp.float32)
    emb = emb.at[:, 0::2].set(s).at[:, 1::2].set(c)
    return emb


def init_params(key):
    ks = jax.random.split(key, 14)

    def unif(k, shape, fan_in):
        b = 1.0 / math.sqrt(fan_in)
        return jax.random.uniform(k, shape, jnp.float32, -b, b)

    glorot_b = math.sqrt(6.0 / (D_K + D_K))
    params = {
        "wk": unif(ks[0], (NUM_TYPES, IN_DIM, OUT_DIM), IN_DIM),
        "bk": unif(ks[1], (NUM_TYPES, OUT_DIM), IN_DIM),
        "wq": unif(ks[2], (NUM_TYPES, IN_DIM, OUT_DIM), IN_DIM),
        "bq": unif(ks[3], (NUM_TYPES, OUT_DIM), IN_DIM),
        "wv": unif(ks[4], (NUM_TYPES, IN_DIM, OUT_DIM), IN_DIM),
        "bv": unif(ks[5], (NUM_TYPES, OUT_DIM), IN_DIM),
        "wa": unif(ks[6], (NUM_TYPES, OUT_DIM, OUT_DIM), OUT_DIM),
        "ba": unif(ks[7], (NUM_TYPES, OUT_DIM), OUT_DIM),
        "rel_att": jax.random.uniform(ks[8], (NUM_RELATIONS, N_HEADS, D_K, D_K),
                                      jnp.float32, -glorot_b, glorot_b),
        "rel_msg": jax.random.uniform(ks[9], (NUM_RELATIONS, N_HEADS, D_K, D_K),
                                      jnp.float32, -glorot_b, glorot_b),
        "rel_pri": jnp.ones((NUM_RELATIONS, N_HEADS), jnp.float32),
        "skip": jnp.ones((NUM_TYPES,), jnp.float32),
        "gamma": jnp.ones((NUM_TYPES, OUT_DIM), jnp.float32),
        "beta": jnp.zeros((NUM_TYPES, OUT_DIM), jnp.float32),
        "rte_table": make_rte_table(IN_DIM, MAX_LEN),
        "w_rte": unif(ks[10], (2 * IN_DIM, IN_DIM), 2 * IN_DIM),
        "b_rte": unif(ks[11], (1, IN_DIM), 2 * IN_DIM),
    }
    return params


# =================================================================================
# Weight packing (wrapper-side, one-time per call)
# =================================================================================
def _block_diag(mats):
    # mats: [H, d, d] -> [H*d, H*d]
    h, d, _ = mats.shape
    out = jnp.zeros((h * d, h * d), mats.dtype)
    for i in range(h):
        out = out.at[i * d:(i + 1) * d, i * d:(i + 1) * d].set(mats[i])
    return out


def _pack_weights(params):
    T, R, O, I = NUM_TYPES, NUM_RELATIONS, OUT_DIM, IN_DIM
    w = jnp.zeros((2 * I, W_COLS), jnp.float32)
    for t in range(T):
        base = OFF_KVQ + t * 2 * O
        w = w.at[0:I, base:base + O].set(params["wk"][t])              # rows 0:32 <- src feats
        w = w.at[0:I, base + O:base + 2 * O].set(params["wv"][t])
        qb = OFF_KVQ + 2 * T * O + t * O
        w = w.at[I:2 * I, qb:qb + O].set(params["wq"][t])              # rows 32:64 <- tgt feats
    for r in range(R):
        w = w.at[0:O, OFF_REL + r * O:OFF_REL + (r + 1) * O].set(
            _block_diag(params["rel_att"][r]))                          # k-part rows
        w = w.at[O:2 * O, OFF_REL + R * O + r * O:OFF_REL + R * O + (r + 1) * O].set(
            _block_diag(params["rel_msg"][r]))                          # v-part rows
    # constant head-sum + head-expand matrix: 1 iff same head
    hd = np.arange(O) // D_K
    w_head = jnp.asarray((hd[:, None] == hd[None, :]).astype(np.float32))
    w = w.at[0:O, OFF_HEAD:OFF_HEAD + O].set(w_head)
    for t in range(T):
        w = w.at[0:O, OFF_A + t * O:OFF_A + (t + 1) * O].set(params["wa"][t])
    w = w.astype(jnp.bfloat16)

    misc = jnp.zeros((MISC_ROWS, MISC_COLS), jnp.float32)
    for t in range(T):
        base = t * 2 * O
        misc = misc.at[ROW_BIAS, base:base + O].set(params["bk"][t])
        misc = misc.at[ROW_BIAS, base + O:base + 2 * O].set(params["bv"][t])
        misc = misc.at[ROW_BIAS, 2 * T * O + t * O:2 * T * O + (t + 1) * O].set(params["bq"][t])
        misc = misc.at[ROW_BA, t * O:(t + 1) * O].set(params["ba"][t])
        misc = misc.at[ROW_GAMMA, t * O:(t + 1) * O].set(params["gamma"][t])
        misc = misc.at[ROW_BETA, t * O:(t + 1) * O].set(params["beta"][t])
        misc = misc.at[ROW_ALPHA, t * O:(t + 1) * O].set(
            jnp.broadcast_to(jax.nn.sigmoid(params["skip"][t]), (O,)))
    for r in range(R):
        misc = misc.at[ROW_PRI + r, 0:O].set(
            jnp.repeat(params["rel_pri"][r], D_K) / SQRT_DK)
    return w, misc


# =================================================================================
# Fused kernel: edge message -> streaming segment-softmax + scatter-add -> update
# =================================================================================
def _hgt_fused_kernel(nb_ref, eb_ref, first_ref, last_ref, valid_ref,
                      eids_ref, trow_ref, ef_ref, nx_ref, ntype_ref, w_ref, misc_ref,
                      out_ref, gm_sc, la_sc):
    f32, bf16 = jnp.float32, jnp.bfloat16
    wi = pl.program_id(0)
    nb = nb_ref[wi]
    O, T, R = OUT_DIM, NUM_TYPES, NUM_RELATIONS
    BN = out_ref.shape[0]

    @pl.when(first_ref[wi] == 1)
    def _init():
        gm_sc[...] = jnp.full_like(gm_sc, -1e30)
        la_sc[...] = jnp.zeros_like(la_sc)

    @pl.when(valid_ref[wi] == 1)
    def _edges():
        w = w_ref[...]                    # [64, 512] bf16 (resident)
        misc = misc_ref[...]              # [8, 192]  f32  (resident)
        eids = eids_ref[...]              # [BE, 8]   int32
        s_id = eids[:, 0:1]
        t_id = eids[:, 1:2]
        r_id = eids[:, 2:3]
        tcol = eids[:, 3:4]               # target node id (column layout), -1 for padding

        # ---- fused typed K/V (source) + Q (target): one 64-deep, 192-wide MXU dot ----
        y = jnp.dot(ef_ref[...], w[:, OFF_KVQ:OFF_KVQ + 6 * O],
                    preferred_element_type=f32) + misc[ROW_BIAS:ROW_BIAS + 1, 0:6 * O]
        kv = jnp.where(s_id == 0, y[:, 0:2 * O], y[:, 2 * O:4 * O])        # [BE, 2*O] = [k|v]
        q = jnp.where(t_id == 0, y[:, 4 * O:5 * O], y[:, 5 * O:6 * O])     # [BE, O]

        # ---- fused relation att|msg transform: one 64-deep, 128-wide block-diag dot ----
        z = jnp.dot(kv.astype(bf16), w[:, OFF_REL:OFF_REL + 2 * R * O],
                    preferred_element_type=f32)
        krot = jnp.where(r_id == 0, z[:, 0:O], z[:, O:2 * O])
        msg = jnp.where(r_id == 0, z[:, 2 * O:3 * O], z[:, 3 * O:4 * O])

        # ---- per-head logits via constant head-sum/expand block; pri pre-scaled by 1/sqrt_dk ----
        pri = jnp.where(r_id == 0, misc[ROW_PRI:ROW_PRI + 1, 0:O],
                        misc[ROW_PRI + 1:ROW_PRI + 2, 0:O])
        attw = jnp.dot((q * krot).astype(bf16), w[0:O, OFF_HEAD:OFF_HEAD + O],
                       preferred_element_type=f32) * pri                    # [BE, O]

        # ---- streaming per-head softmax state (max restricted to this node block's edges) ----
        in_blk = (tcol >= nb * BN) & (tcol < (nb + 1) * BN)                 # [BE, 1]
        bmax = jnp.max(jnp.where(in_blk, attw, -1e30), axis=0, keepdims=True)
        g_old = gm_sc[...]
        g_new = jnp.maximum(g_old, bmax)
        resc = jnp.exp(g_old - g_new)                                       # [1, O]
        # clamp <=0: out-of-block / padded edges may exceed the running max but never scatter
        exw = jnp.exp(jnp.minimum(attw - g_new, 0.0))                       # [BE, O]

        # ---- block-local scatter one-hot from [1,BE] target ids vs [BN,1] column iota ----
        nid_col = nb * BN + lax.broadcasted_iota(jnp.int32, (BN, 1), 0)
        at_oh = (trow_ref[...] == nid_col).astype(bf16)                     # [BN, BE]

        # ---- fused denominator + weighted-message scatter: ONE [BN,BE]x[BE,2*O] dot ----
        cat = jnp.concatenate([exw, exw * msg], axis=1).astype(bf16)        # [BE, 2*O]
        scat = jnp.dot(at_oh, cat, preferred_element_type=f32)              # [BN, 2*O]
        la_sc[...] = la_sc[...] * jnp.concatenate([resc, resc], axis=1) + scat
        gm_sc[...] = g_new

    @pl.when(last_ref[wi] == 1)
    def _finalize():
        w = w_ref[...]
        misc = misc_ref[...]
        la = la_sc[...]
        l = la[:, 0:O]
        aggr = la[:, O:2 * O] / jnp.where(l > 0.0, l, 1.0)   # isolated nodes -> 0 (== segment_sum)
        # TODO(synk): exact erf-GELU replaced by the tanh approximation (max |diff| ~3e-4).
        c0 = math.sqrt(2.0 / math.pi)
        hh = 0.5 * aggr * (1.0 + jnp.tanh(c0 * (aggr + 0.044715 * aggr * aggr * aggr)))
        tr = jnp.dot(hh.astype(jnp.bfloat16), w[0:O, OFF_A:OFF_A + T * O],
                     preferred_element_type=jnp.float32) + misc[ROW_BA:ROW_BA + 1, 0:T * O]
        x = nx_ref[...]
        nt = ntype_ref[...]                                                  # [BN, 1] int32
        trn = jnp.where(nt == 0, tr[:, 0:O], tr[:, O:2 * O])
        alpha = jnp.where(nt == 0, misc[ROW_ALPHA:ROW_ALPHA + 1, 0:O],
                          misc[ROW_ALPHA:ROW_ALPHA + 1, O:2 * O])
        pre = trn * alpha + x * (1.0 - alpha)
        mu = jnp.mean(pre, axis=1, keepdims=True)
        var = jnp.mean((pre - mu) ** 2, axis=1, keepdims=True)
        gamma = jnp.where(nt == 0, misc[ROW_GAMMA:ROW_GAMMA + 1, 0:O],
                          misc[ROW_GAMMA:ROW_GAMMA + 1, O:2 * O])
        beta = jnp.where(nt == 0, misc[ROW_BETA:ROW_BETA + 1, 0:O],
                         misc[ROW_BETA:ROW_BETA + 1, O:2 * O])
        out_ref[...] = (pre - mu) * lax.rsqrt(var + LN_EPS) * gamma + beta


# =================================================================================
# GeneralConv('hgt') forward = HGTConv.propagate (message -> softmax/agg -> update)
# =================================================================================
def general_conv_forward(params, meta_xs, node_type, edge_index, edge_type, edge_time,
                         conv_name="hgt"):
    assert conv_name == "hgt"
    assert IN_DIM == OUT_DIM
    N, E = meta_xs.shape[0], edge_index.shape[1]
    src, tgt = edge_index[0], edge_index[1]          # PyG convention: row0=source j, row1=target i

    # ---- tile sizes (sweepable; VMEM use per work item ~1 MiB, v7x-safe) ----
    BN = min(128, _round_up(max(N, 1), 8))
    N_pad = _round_up(max(N, 1), BN)
    BE = min(512, _round_up(max(E, 1), 128))
    E_pad = _round_up(max(E, 1), BE)
    NB = N_pad // BN
    EB = E_pad // BE
    W = EB + 2 * NB                                   # static staircase bound on work items

    # ---- sort edges by target so each node block's edges are a contiguous range ----
    order = jnp.argsort(tgt)
    src_s = src[order]
    tgt_s = tgt[order].astype(jnp.int32)
    et_s = edge_type[order]
    tm_s = edge_time[order]

    hi = jax.lax.Precision.HIGHEST
    rte_proj = jnp.dot(params["rte_table"], params["w_rte"], precision=hi) + params["b_rte"]
    srcf = meta_xs[src_s] + rte_proj[tm_s]            # RTE added to source features
    tgtf = meta_xs[tgt_s]
    ef = jnp.zeros((E_pad, 2 * IN_DIM), jnp.float32)
    ef = ef.at[:E, 0:IN_DIM].set(srcf).at[:E, IN_DIM:2 * IN_DIM].set(tgtf).astype(jnp.bfloat16)

    eids = jnp.zeros((E_pad, 8), jnp.int32)
    eids = eids.at[:E, 0].set(node_type[src_s])
    eids = eids.at[:E, 1].set(node_type[tgt_s])
    eids = eids.at[:E, 2].set(et_s)
    eids = eids.at[:, 3].set(-1).at[:E, 3].set(tgt_s)                 # padding -> -1
    trow = jnp.full((1, E_pad), -1, jnp.int32).at[0, :E].set(tgt_s)   # padded edges hit no node

    nx = jnp.zeros((N_pad, IN_DIM), jnp.float32).at[:N].set(meta_xs)
    ntype = jnp.zeros((N_pad, 1), jnp.int32).at[:N, 0].set(node_type)

    # ---- per-node-block edge-block ranges -> flattened work list (scalar prefetch) ----
    blk_of_edge = tgt_s // BN                                          # sorted, length E
    arange_nb = jnp.arange(NB, dtype=jnp.int32)
    start = jnp.searchsorted(blk_of_edge, arange_nb, side="left").astype(jnp.int32)
    end = jnp.searchsorted(blk_of_edge, arange_nb, side="right").astype(jnp.int32)
    has = end > start
    first_blk = jnp.minimum(start // BE, EB - 1)
    last_blk = jnp.where(has, jnp.maximum(end - 1, 0) // BE, first_blk)
    nblk = jnp.where(has, last_blk - first_blk + 1, 0)
    nw = jnp.maximum(nblk, 1).astype(jnp.int32)                        # empty blocks still finalize
    woff = jnp.concatenate([jnp.zeros((1,), jnp.int32),
                            jnp.cumsum(nw)[:-1].astype(jnp.int32)])
    total = jnp.sum(nw)

    wids = jnp.arange(W, dtype=jnp.int32)
    nb_w = jnp.clip(jnp.searchsorted(woff, wids, side="right") - 1, 0, NB - 1).astype(jnp.int32)
    j_in = wids - woff[nb_w]
    eb_w = (first_blk[nb_w] + jnp.minimum(j_in, nw[nb_w] - 1)).astype(jnp.int32)
    is_real = wids < total
    first_w = ((j_in == 0) & is_real).astype(jnp.int32)
    last_w = ((j_in == nw[nb_w] - 1) & is_real).astype(jnp.int32)
    valid_w = is_real.astype(jnp.int32)

    w_slab, misc = _pack_weights(params)

    def _e_idx(w, nb, eb, fi, la, va):
        return (eb[w], 0)

    def _t_idx(w, nb, eb, fi, la, va):
        return (0, eb[w])

    def _n_idx(w, nb, eb, fi, la, va):
        return (nb[w], 0)

    def _c_idx(w, nb, eb, fi, la, va):
        return (0, 0)

    out = pl.pallas_call(
        _hgt_fused_kernel,
        out_shape=jax.ShapeDtypeStruct((N_pad, OUT_DIM), jnp.float32),
        grid_spec=pltpu.PrefetchScalarGridSpec(
            num_scalar_prefetch=5,
            grid=(W,),
            in_specs=[
                pl.BlockSpec((BE, 8), _e_idx),                         # packed edge ids
                pl.BlockSpec((1, BE), _t_idx),                         # target ids (row layout)
                pl.BlockSpec((BE, 2 * IN_DIM), _e_idx),                # [src(+RTE) | tgt] feats bf16
                pl.BlockSpec((BN, IN_DIM), _n_idx),                    # node features (skip)
                pl.BlockSpec((BN, 1), _n_idx),                         # node types
                pl.BlockSpec((2 * IN_DIM, W_COLS), _c_idx),            # packed weights (bf16)
                pl.BlockSpec((MISC_ROWS, MISC_COLS), _c_idx),          # biases/LN/pri/skip
            ],
            out_specs=pl.BlockSpec((BN, OUT_DIM), _n_idx),
            scratch_shapes=[
                pltpu.VMEM((1, OUT_DIM), jnp.float32),                 # running per-head logit max
                pltpu.VMEM((BN, 2 * OUT_DIM), jnp.float32),            # [denominator | weighted-msg]
            ]),
        compiler_params=pltpu.CompilerParams(
            dimension_semantics=("arbitrary",),
            vmem_limit_bytes=32 * 1024 * 1024),
    )(nb_w, eb_w, first_w, last_w, valid_w, eids, trow, ef, nx, ntype, w_slab, misc)
    return out[:N]   # dropout layers are identity (eval mode)


# =================================================================================
# Pure-JAX reference (mirrors the PyTorch code) for validation
# =================================================================================
def hgt_reference(params, node_inp, node_type, edge_index, edge_type, edge_time):
    hi = jax.lax.Precision.HIGHEST
    src, tgt = edge_index[0], edge_index[1]
    N = node_inp.shape[0]
    E = src.shape[0]
    src_x = node_inp[src]
    tgt_x = node_inp[tgt]
    rte = params["rte_table"][edge_time]
    src_feat = src_x + jnp.dot(rte, params["w_rte"], precision=hi) + params["b_rte"]
    st, tt = node_type[src], node_type[tgt]
    k = jnp.einsum("ed,edo->eo", src_feat, params["wk"][st], precision=hi) + params["bk"][st]
    q = jnp.einsum("ed,edo->eo", tgt_x, params["wq"][tt], precision=hi) + params["bq"][tt]
    v = jnp.einsum("ed,edo->eo", src_feat, params["wv"][st], precision=hi) + params["bv"][st]
    k = k.reshape(E, N_HEADS, D_K)
    q = q.reshape(E, N_HEADS, D_K)
    v = v.reshape(E, N_HEADS, D_K)
    krot = jnp.einsum("ehd,ehdk->ehk", k, params["rel_att"][edge_type], precision=hi)
    msg = jnp.einsum("ehd,ehdk->ehk", v, params["rel_msg"][edge_type], precision=hi)
    att = (q * krot).sum(-1) * params["rel_pri"][edge_type] / SQRT_DK
    mx = jax.ops.segment_max(att, tgt, num_segments=N)
    ex = jnp.exp(att - mx[tgt])
    den = jax.ops.segment_sum(ex, tgt, num_segments=N)
    alpha = ex / den[tgt]
    res = (msg * alpha[:, :, None]).reshape(E, OUT_DIM)
    aggr = jax.ops.segment_sum(res, tgt, num_segments=N)
    h = jax.nn.gelu(aggr, approximate=False)
    trans = jnp.einsum("no,nop->np", h, params["wa"][node_type], precision=hi) + params["ba"][node_type]
    a = jax.nn.sigmoid(params["skip"])[node_type][:, None]
    pre = trans * a + node_inp * (1.0 - a)
    mu = pre.mean(-1, keepdims=True)
    var = ((pre - mu) ** 2).mean(-1, keepdims=True)
    return (pre - mu) / jnp.sqrt(var + LN_EPS) * params["gamma"][node_type] + params["beta"][node_type]


# =================================================================================
if __name__ == "__main__":
    key = jax.random.PRNGKey(0)
    kp, k1, k2, k3, k4, k5 = jax.random.split(key, 6)
    params = init_params(kp)

    N, E = 16, 64
    node_inp = jax.random.normal(k1, (N, IN_DIM), jnp.float32)
    node_type = jax.random.randint(k2, (N,), 0, NUM_TYPES)
    edge_index = jax.random.randint(k3, (2, E), 0, N)
    edge_type = jax.random.randint(k4, (E,), 0, NUM_RELATIONS)
    edge_time = jax.random.randint(k5, (E,), 0, MAX_LEN)

    fwd = jax.jit(general_conv_forward)
    out = jax.block_until_ready(fwd(params, node_inp, node_type, edge_index, edge_type, edge_time))

    ref = jax.block_until_ready(
        hgt_reference(params, node_inp, node_type, edge_index, edge_type, edge_time))

    assert out.shape == (N, OUT_DIM)
    assert np.isfinite(np.asarray(out)).all()
    # bf16 MXU operands + tanh-GELU -> slightly looser tolerance vs f32 reference.
    np.testing.assert_allclose(np.asarray(out), np.asarray(ref), rtol=3e-2, atol=3e-2)
    print("KERNEL_OK")
</pallas_src>

<mosaic_0001>
module attributes {stable_mosaic.version = 11 : i64} {
  func.func @_hgt_fused_kernel(%arg0: i32, %arg1: memref<3xi32, #tpu.memory_space<smem>>, %arg2: memref<3xi32, #tpu.memory_space<smem>>, %arg3: memref<3xi32, #tpu.memory_space<smem>>, %arg4: memref<3xi32, #tpu.memory_space<smem>>, %arg5: memref<3xi32, #tpu.memory_space<smem>>, %arg6: memref<128x8xi32, #tpu.memory_space<vmem>>, %arg7: memref<1x128xi32, #tpu.memory_space<vmem>>, %arg8: memref<128x64xbf16, #tpu.memory_space<vmem>>, %arg9: memref<16x32xf32, #tpu.memory_space<vmem>>, %arg10: memref<16x1xi32, #tpu.memory_space<vmem>>, %arg11: memref<64x512xbf16, #tpu.memory_space<vmem>>, %arg12: memref<8x192xf32, #tpu.memory_space<vmem>>, %arg13: memref<16x32xf32, #tpu.memory_space<vmem>>, %arg14: memref<1x32xf32, #tpu.memory_space<vmem>>, %arg15: memref<16x64xf32, #tpu.memory_space<vmem>>) attributes {dimension_semantics = [#tpu.dimension_semantics<arbitrary>], iteration_bounds = array<i64: 3>, scalar_prefetch = 5 : i64, scratch_operands = 2 : i64, tpu.core_type = #tpu.core_type<tc>, window_params = [{transform_indices = @transform_0, window_bounds = array<i64: 128, 8>}, {transform_indices = @transform_1, window_bounds = array<i64: 1, 128>}, {transform_indices = @transform_2, window_bounds = array<i64: 128, 64>}, {transform_indices = @transform_3, window_bounds = array<i64: 16, 32>}, {transform_indices = @transform_4, window_bounds = array<i64: 16, 1>}, {pipeline_mode = #tpu.pipeline_mode<synchronous>, transform_indices = @transform_5, window_bounds = array<i64: 64, 512>}, {pipeline_mode = #tpu.pipeline_mode<synchronous>, transform_indices = @transform_6, window_bounds = array<i64: 8, 192>}, {transform_indices = @transform_7, window_bounds = array<i64: 16, 32>}]} {
    %0 = arith.index_cast %arg0 : i32 to index
    %1 = memref.load %arg1[%0] : memref<3xi32, #tpu.memory_space<smem>>
    %2 = arith.index_cast %arg0 : i32 to index
    %3 = memref.load %arg3[%2] : memref<3xi32, #tpu.memory_space<smem>>
    %c1_i32 = arith.constant 1 : i32
    %4 = arith.cmpi eq, %3, %c1_i32 : i32
    %5 = arith.extui %4 : i1 to i32
    %c0_i32 = arith.constant 0 : i32
    %6 = arith.cmpi ne, %5, %c0_i32 : i32
    scf.if %6 {
      %cst = arith.constant -1.000000e+30 : f32
      %17 = vector.broadcast %cst : f32 to vector<1x32xf32>
      %c0 = arith.constant 0 : index
      %c0_4 = arith.constant 0 : index
      %18 = vector.load %arg14[%c0, %c0_4] : memref<1x32xf32, #tpu.memory_space<vmem>>, vector<1x32xf32>
      tpu.vector_store %arg14[%c0, %c0_4], %17 {strides = array<i32>} : memref<1x32xf32, #tpu.memory_space<vmem>>, vector<1x32xf32>,
      %cst_5 = arith.constant 0.000000e+00 : f32
      %19 = vector.broadcast %cst_5 : f32 to vector<16x64xf32>
      %c0_6 = arith.constant 0 : index
      %c0_7 = arith.constant 0 : index
      %20 = vector.load %arg15[%c0_6, %c0_7] : memref<16x64xf32, #tpu.memory_space<vmem>>, vector<16x64xf32>
      tpu.vector_store %arg15[%c0_6, %c0_7], %19 {strides = array<i32>} : memref<16x64xf32, #tpu.memory_space<vmem>>, vector<16x64xf32>,
    } else {
    }
    %7 = arith.index_cast %arg0 : i32 to index
    %8 = memref.load %arg5[%7] : memref<3xi32, #tpu.memory_space<smem>>
    %c1_i32_0 = arith.constant 1 : i32
    %9 = arith.cmpi eq, %8, %c1_i32_0 : i32
    %10 = arith.extui %9 : i1 to i32
    %c0_i32_1 = arith.constant 0 : i32
    %11 = arith.cmpi ne, %10, %c0_i32_1 : i32
    scf.if %11 {
      %c0 = arith.constant 0 : index
      %c0_4 = arith.constant 0 : index
      %17 = vector.load %arg11[%c0, %c0_4] : memref<64x512xbf16, #tpu.memory_space<vmem>>, vector<64x512xbf16>
      %c0_5 = arith.constant 0 : index
      %c0_6 = arith.constant 0 : index
      %18 = vector.load %arg12[%c0_5, %c0_6] : memref<8x192xf32, #tpu.memory_space<vmem>>, vector<8x192xf32>
      %c0_7 = arith.constant 0 : index
      %c0_8 = arith.constant 0 : index
      %19 = vector.load %arg6[%c0_7, %c0_8] : memref<128x8xi32, #tpu.memory_space<vmem>>, vector<128x8xi32>
      %20 = vector.extract_strided_slice %19 {offsets = [0, 0], sizes = [128, 1], strides = [1, 1]} : vector<128x8xi32> to vector<128x1xi32>
      %21 = vector.extract_strided_slice %19 {offsets = [0, 1], sizes = [128, 1], strides = [1, 1]} : vector<128x8xi32> to vector<128x1xi32>
      %22 = vector.extract_strided_slice %19 {offsets = [0, 2], sizes = [128, 1], strides = [1, 1]} : vector<128x8xi32> to vector<128x1xi32>
      %23 = vector.extract_strided_slice %19 {offsets = [0, 3], sizes = [128, 1], strides = [1, 1]} : vector<128x8xi32> to vector<128x1xi32>
      %c0_9 = arith.constant 0 : index
      %c0_10 = arith.constant 0 : index
      %24 = vector.load %arg8[%c0_9, %c0_10] : memref<128x64xbf16, #tpu.memory_space<vmem>>, vector<128x64xbf16>
      %25 = vector.extract_strided_slice %17 {offsets = [0, 0], sizes = [64, 192], strides = [1, 1]} : vector<64x512xbf16> to vector<64x192xbf16>
      %cst = arith.constant dense<0.000000e+00> : vector<128x192xf32>
      %26 = tpu.matmul %24, %25, %cst {dimension_numbers = #tpu.dot_dimension_numbers<[1], [0], [0], [1], [0, 0, 1, 1], [], []>} : vector<128x64xbf16>, vector<64x192xbf16>, vector<128x192xf32> -> vector<128x192xf32>
      %27 = vector.extract_strided_slice %18 {offsets = [0, 0], sizes = [1, 192], strides = [1, 1]} : vector<8x192xf32> to vector<1x192xf32>
      %28 = vector.broadcast %27 : vector<1x192xf32> to vector<128x192xf32>
      %29 = arith.addf %26, %28 : vector<128x192xf32>
      %c0_i32_11 = arith.constant 0 : i32
      %30 = vector.broadcast %c0_i32_11 : i32 to vector<128x1xi32>
      %31 = arith.cmpi eq, %20, %30 : vector<128x1xi32>
      %32 = vector.extract_strided_slice %29 {offsets = [0, 0], sizes = [128, 64], strides = [1, 1]} : vector<128x192xf32> to vector<128x64xf32>
      %33 = vector.extract_strided_slice %29 {offsets = [0, 64], sizes = [128, 64], strides = [1, 1]} : vector<128x192xf32> to vector<128x64xf32>
      %34 = vector.shape_cast %31 : vector<128x1xi1> to vector<128x1xi1>
      %35 = vector.broadcast %34 : vector<128x1xi1> to vector<128x64xi1>
      %36 = arith.select %35, %32, %33 : vector<128x64xi1>, vector<128x64xf32>
      %c0_i32_12 = arith.constant 0 : i32
      %37 = vector.broadcast %c0_i32_12 : i32 to vector<128x1xi32>
      %38 = arith.cmpi eq, %21, %37 : vector<128x1xi32>
      %39 = vector.extract_strided_slice %29 {offsets = [0, 128], sizes = [128, 32], strides = [1, 1]} : vector<128x192xf32> to vector<128x32xf32>
      %40 = vector.extract_strided_slice %29 {offsets = [0, 160], sizes = [128, 32], strides = [1, 1]} : vector<128x192xf32> to vector<128x32xf32>
      %41 = vector.shape_cast %38 : vector<128x1xi1> to vector<128x1xi1>
      %42 = vector.broadcast %41 : vector<128x1xi1> to vector<128x32xi1>
      %43 = arith.select %42, %39, %40 : vector<128x32xi1>, vector<128x32xf32>
      %44 = arith.truncf %36 : vector<128x64xf32> to vector<128x64xbf16>
      %45 = vector.extract_strided_slice %17 {offsets = [0, 256], sizes = [64, 128], strides = [1, 1]} : vector<64x512xbf16> to vector<64x128xbf16>
      %cst_13 = arith.constant dense<0.000000e+00> : vector<128x128xf32>
      %46 = tpu.matmul %44, %45, %cst_13 {dimension_numbers = #tpu.dot_dimension_numbers<[1], [0], [0], [1], [0, 0, 1, 1], [], []>} : vector<128x64xbf16>, vector<64x128xbf16>, vector<128x128xf32> -> vector<128x128xf32>
      %c0_i32_14 = arith.constant 0 : i32
      %47 = vector.broadcast %c0_i32_14 : i32 to vector<128x1xi32>
      %48 = arith.cmpi eq, %22, %47 : vector<128x1xi32>
      %49 = vector.extract_strided_slice %46 {offsets = [0, 0], sizes = [128, 32], strides = [1, 1]} : vector<128x128xf32> to vector<128x32xf32>
      %50 = vector.extract_strided_slice %46 {offsets = [0, 32], sizes = [128, 32], strides = [1, 1]} : vector<128x128xf32> to vector<128x32xf32>
      %51 = vector.shape_cast %48 : vector<128x1xi1> to vector<128x1xi1>
      %52 = vector.broadcast %51 : vector<128x1xi1> to vector<128x32xi1>
      %53 = arith.select %52, %49, %50 : vector<128x32xi1>, vector<128x32xf32>
      %c0_i32_15 = arith.constant 0 : i32
      %54 = vector.broadcast %c0_i32_15 : i32 to vector<128x1xi32>
      %55 = arith.cmpi eq, %22, %54 : vector<128x1xi32>
      %56 = vector.extract_strided_slice %46 {offsets = [0, 64], sizes = [128, 32], strides = [1, 1]} : vector<128x128xf32> to vector<128x32xf32>
      %57 = vector.extract_strided_slice %46 {offsets = [0, 96], sizes = [128, 32], strides = [1, 1]} : vector<128x128xf32> to vector<128x32xf32>
      %58 = vector.shape_cast %55 : vector<128x1xi1> to vector<128x1xi1>
      %59 = vector.broadcast %58 : vector<128x1xi1> to vector<128x32xi1>
      %60 = arith.select %59, %56, %57 : vector<128x32xi1>, vector<128x32xf32>
      %c0_i32_16 = arith.constant 0 : i32
      %61 = vector.broadcast %c0_i32_16 : i32 to vector<128x1xi32>
      %62 = arith.cmpi eq, %22, %61 : vector<128x1xi32>
      %63 = vector.extract_strided_slice %18 {offsets = [4, 0], sizes = [1, 32], strides = [1, 1]} : vector<8x192xf32> to vector<1x32xf32>
      %64 = vector.extract_strided_slice %18 {offsets = [5, 0], sizes = [1, 32], strides = [1, 1]} : vector<8x192xf32> to vector<1x32xf32>
      %65 = vector.shape_cast %62 : vector<128x1xi1> to vector<128x1xi1>
      %66 = vector.broadcast %65 : vector<128x1xi1> to vector<128x32xi1>
      %67 = vector.shape_cast %63 : vector<1x32xf32> to vector<1x32xf32>
      %68 = vector.broadcast %67 : vector<1x32xf32> to vector<128x32xf32>
      %69 = vector.shape_cast %64 : vector<1x32xf32> to vector<1x32xf32>
      %70 = vector.broadcast %69 : vector<1x32xf32> to vector<128x32xf32>
      %71 = arith.select %66, %68, %70 : vector<128x32xi1>, vector<128x32xf32>
      %72 = arith.mulf %43, %53 : vector<128x32xf32>
      %73 = arith.truncf %72 : vector<128x32xf32> to vector<128x32xbf16>
      %74 = vector.extract_strided_slice %17 {offsets = [0, 384], sizes = [32, 32], strides = [1, 1]} : vector<64x512xbf16> to vector<32x32xbf16>
      %cst_17 = arith.constant dense<0.000000e+00> : vector<128x32xf32>
      %75 = tpu.matmul %73, %74, %cst_17 {dimension_numbers = #tpu.dot_dimension_numbers<[1], [0], [0], [1], [0, 0, 1, 1], [], []>} : vector<128x32xbf16>, vector<32x32xbf16>, vector<128x32xf32> -> vector<128x32xf32>
      %76 = arith.mulf %75, %71 : vector<128x32xf32>
      %c16_i32 = arith.constant 16 : i32
      %77 = arith.muli %1, %c16_i32 : i32
      %78 = vector.broadcast %77 : i32 to vector<128x1xi32>
      %79 = arith.cmpi sge, %23, %78 : vector<128x1xi32>
      %c1_i32_18 = arith.constant 1 : i32
      %80 = arith.addi %1, %c1_i32_18 : i32
      %c16_i32_19 = arith.constant 16 : i32
      %81 = arith.muli %80, %c16_i32_19 : i32
      %82 = vector.broadcast %81 : i32 to vector<128x1xi32>
      %83 = arith.cmpi slt, %23, %82 : vector<128x1xi32>
      %84 = arith.andi %79, %83 : vector<128x1xi1>
      %cst_20 = arith.constant -1.000000e+30 : f32
      %85 = vector.shape_cast %84 : vector<128x1xi1> to vector<128x1xi1>
      %86 = vector.broadcast %85 : vector<128x1xi1> to vector<128x32xi1>
      %87 = vector.broadcast %cst_20 : f32 to vector<128x32xf32>
      %88 = arith.select %86, %76, %87 : vector<128x32xi1>, vector<128x32xf32>
      %cst_21 = arith.constant dense<0xFF800000> : vector<32xf32>
      %89 = vector.multi_reduction <maximumf>, %88, %cst_21 [0] : vector<128x32xf32> to vector<32xf32>
      %90 = vector.shape_cast %89 : vector<32xf32> to vector<1x32xf32>
      %c0_22 = arith.constant 0 : index
      %c0_23 = arith.constant 0 : index
      %91 = vector.load %arg14[%c0_22, %c0_23] : memref<1x32xf32, #tpu.memory_space<vmem>>, vector<1x32xf32>
      %92 = arith.maximumf %91, %90 : vector<1x32xf32>
      %93 = arith.subf %91, %92 : vector<1x32xf32>
      %94 = math.exp %93 : vector<1x32xf32>
      %95 = vector.broadcast %92 : vector<1x32xf32> to vector<128x32xf32>
      %96 = arith.subf %76, %95 : vector<128x32xf32>
      %cst_24 = arith.constant 0.000000e+00 : f32
      %97 = vector.broadcast %cst_24 : f32 to vector<128x32xf32>
      %98 = arith.minimumf %96, %97 : vector<128x32xf32>
      %99 = math.exp %98 : vector<128x32xf32>
      %c16_i32_25 = arith.constant 16 : i32
      %100 = arith.muli %1, %c16_i32_25 : i32
      %101 = tpu.iota {dimensions = array<i32: 0>} : vector<16x1xi32>
      %102 = vector.broadcast %100 : i32 to vector<16x1xi32>
      %103 = arith.addi %102, %101 : vector<16x1xi32>
      %c0_26 = arith.constant 0 : index
      %c0_27 = arith.constant 0 : index
      %104 = vector.load %arg7[%c0_26, %c0_27] : memref<1x128xi32, #tpu.memory_space<vmem>>, vector<1x128xi32>
      %105 = vector.broadcast %104 : vector<1x128xi32> to vector<16x128xi32>
      %106 = vector.broadcast %103 : vector<16x1xi32> to vector<16x128xi32>
      %107 = arith.cmpi eq, %105, %106 : vector<16x128xi32>
      %108 = arith.extui %107 : vector<16x128xi1> to vector<16x128xi32>
      %109 = arith.sitofp %108 : vector<16x128xi32> to vector<16x128xf32>
      %110 = arith.truncf %109 : vector<16x128xf32> to vector<16x128xbf16>
      %111 = arith.mulf %99, %60 : vector<128x32xf32>
      %112 = tpu.concatenate %99, %111 in 1 : vector<128x32xf32>, vector<128x32xf32> -> vector<128x64xf32>
      %113 = arith.truncf %112 : vector<128x64xf32> to vector<128x64xbf16>
      %cst_28 = arith.constant dense<0.000000e+00> : vector<16x64xf32>
      %114 = tpu.matmul %110, %113, %cst_28 {dimension_numbers = #tpu.dot_dimension_numbers<[1], [0], [0], [1], [0, 0, 1, 1], [], []>} : vector<16x128xbf16>, vector<128x64xbf16>, vector<16x64xf32> -> vector<16x64xf32>
      %c0_29 = arith.constant 0 : index
      %c0_30 = arith.constant 0 : index
      %115 = vector.load %arg15[%c0_29, %c0_30] : memref<16x64xf32, #tpu.memory_space<vmem>>, vector<16x64xf32>
      %116 = tpu.concatenate %94, %94 in 1 : vector<1x32xf32>, vector<1x32xf32> -> vector<1x64xf32>
      %117 = vector.broadcast %116 : vector<1x64xf32> to vector<16x64xf32>
      %118 = arith.mulf %115, %117 : vector<16x64xf32>
      %119 = arith.addf %118, %114 : vector<16x64xf32>
      %c0_31 = arith.constant 0 : index
      %c0_32 = arith.constant 0 : index
      %120 = vector.load %arg15[%c0_31, %c0_32] : memref<16x64xf32, #tpu.memory_space<vmem>>, vector<16x64xf32>
      tpu.vector_store %arg15[%c0_31, %c0_32], %119 {strides = array<i32>} : memref<16x64xf32, #tpu.memory_space<vmem>>, vector<16x64xf32>,
      %c0_33 = arith.constant 0 : index
      %c0_34 = arith.constant 0 : index
      %121 = vector.load %arg14[%c0_33, %c0_34] : memref<1x32xf32, #tpu.memory_space<vmem>>, vector<1x32xf32>
      tpu.vector_store %arg14[%c0_33, %c0_34], %92 {strides = array<i32>} : memref<1x32xf32, #tpu.memory_space<vmem>>, vector<1x32xf32>,
    } else {
    }
    %12 = arith.index_cast %arg0 : i32 to index
    %13 = memref.load %arg4[%12] : memref<3xi32, #tpu.memory_space<smem>>
    %c1_i32_2 = arith.constant 1 : i32
    %14 = arith.cmpi eq, %13, %c1_i32_2 : i32
    %15 = arith.extui %14 : i1 to i32
    %c0_i32_3 = arith.constant 0 : i32
    %16 = arith.cmpi ne, %15, %c0_i32_3 : i32
    scf.if %16 {
      %c0 = arith.constant 0 : index
      %c0_4 = arith.constant 0 : index
      %17 = vector.load %arg11[%c0, %c0_4] : memref<64x512xbf16, #tpu.memory_space<vmem>>, vector<64x512xbf16>
      %c0_5 = arith.constant 0 : index
      %c0_6 = arith.constant 0 : index
      %18 = vector.load %arg12[%c0_5, %c0_6] : memref<8x192xf32, #tpu.memory_space<vmem>>, vector<8x192xf32>
      %c0_7 = arith.constant 0 : index
      %c0_8 = arith.constant 0 : index
      %19 = vector.load %arg15[%c0_7, %c0_8] : memref<16x64xf32, #tpu.memory_space<vmem>>, vector<16x64xf32>
      %20 = vector.extract_strided_slice %19 {offsets = [0, 0], sizes = [16, 32], strides = [1, 1]} : vector<16x64xf32> to vector<16x32xf32>
      %21 = vector.extract_strided_slice %19 {offsets = [0, 32], sizes = [16, 32], strides = [1, 1]} : vector<16x64xf32> to vector<16x32xf32>
      %cst = arith.constant 0.000000e+00 : f32
      %22 = vector.broadcast %cst : f32 to vector<16x32xf32>
      %23 = arith.cmpf ogt, %20, %22 : vector<16x32xf32>
      %cst_9 = arith.constant 1.000000e+00 : f32
      %24 = vector.broadcast %cst_9 : f32 to vector<16x32xf32>
      %25 = arith.select %23, %20, %24 : vector<16x32xi1>, vector<16x32xf32>
      %26 = arith.divf %21, %25 : vector<16x32xf32>
      %cst_10 = arith.constant 5.000000e-01 : f32
      %27 = vector.broadcast %cst_10 : f32 to vector<16x32xf32>
      %28 = arith.mulf %27, %26 : vector<16x32xf32>
      %cst_11 = arith.constant 4.471500e-02 : f32
      %29 = vector.broadcast %cst_11 : f32 to vector<16x32xf32>
      %30 = arith.mulf %29, %26 : vector<16x32xf32>
      %31 = arith.mulf %30, %26 : vector<16x32xf32>
      %32 = arith.mulf %31, %26 : vector<16x32xf32>
      %33 = arith.addf %26, %32 : vector<16x32xf32>
      %cst_12 = arith.constant 0.797884583 : f32
      %34 = vector.broadcast %cst_12 : f32 to vector<16x32xf32>
      %35 = arith.mulf %34, %33 : vector<16x32xf32>
      %36 = math.tanh %35 : vector<16x32xf32>
      %cst_13 = arith.constant 1.000000e+00 : f32
      %37 = vector.broadcast %cst_13 : f32 to vector<16x32xf32>
      %38 = arith.addf %37, %36 : vector<16x32xf32>
      %39 = arith.mulf %28, %38 : vector<16x32xf32>
      %40 = arith.truncf %39 : vector<16x32xf32> to vector<16x32xbf16>
      %41 = vector.extract_strided_slice %17 {offsets = [0, 448], sizes = [32, 64], strides = [1, 1]} : vector<64x512xbf16> to vector<32x64xbf16>
      %cst_14 = arith.constant dense<0.000000e+00> : vector<16x64xf32>
      %42 = tpu.matmul %40, %41, %cst_14 {dimension_numbers = #tpu.dot_dimension_numbers<[1], [0], [0], [1], [0, 0, 1, 1], [], []>} : vector<16x32xbf16>, vector<32x64xbf16>, vector<16x64xf32> -> vector<16x64xf32>
      %43 = vector.extract_strided_slice %18 {offsets = [1, 0], sizes = [1, 64], strides = [1, 1]} : vector<8x192xf32> to vector<1x64xf32>
      %44 = vector.broadcast %43 : vector<1x64xf32> to vector<16x64xf32>
      %45 = arith.addf %42, %44 : vector<16x64xf32>
      %c0_15 = arith.constant 0 : index
      %c0_16 = arith.constant 0 : index
      %46 = vector.load %arg9[%c0_15, %c0_16] : memref<16x32xf32, #tpu.memory_space<vmem>>, vector<16x32xf32>
      %c0_17 = arith.constant 0 : index
      %c0_18 = arith.constant 0 : index
      %47 = vector.load %arg10[%c0_17, %c0_18] : memref<16x1xi32, #tpu.memory_space<vmem>>, vector<16x1xi32>
      %c0_i32_19 = arith.constant 0 : i32
      %48 = vector.broadcast %c0_i32_19 : i32 to vector<16x1xi32>
      %49 = arith.cmpi eq, %47, %48 : vector<16x1xi32>
      %50 = vector.extract_strided_slice %45 {offsets = [0, 0], sizes = [16, 32], strides = [1, 1]} : vector<16x64xf32> to vector<16x32xf32>
      %51 = vector.extract_strided_slice %45 {offsets = [0, 32], sizes = [16, 32], strides = [1, 1]} : vector<16x64xf32> to vector<16x32xf32>
      %52 = vector.shape_cast %49 : vector<16x1xi1> to vector<16x1xi1>
      %53 = vector.broadcast %52 : vector<16x1xi1> to vector<16x32xi1>
      %54 = arith.select %53, %50, %51 : vector<16x32xi1>, vector<16x32xf32>
      %c0_i32_20 = arith.constant 0 : i32
      %55 = vector.broadcast %c0_i32_20 : i32 to vector<16x1xi32>
      %56 = arith.cmpi eq, %47, %55 : vector<16x1xi32>
      %57 = vector.extract_strided_slice %18 {offsets = [6, 0], sizes = [1, 32], strides = [1, 1]} : vector<8x192xf32> to vector<1x32xf32>
      %58 = vector.extract_strided_slice %18 {offsets = [6, 32], sizes = [1, 32], strides = [1, 1]} : vector<8x192xf32> to vector<1x32xf32>
      %59 = vector.shape_cast %56 : vector<16x1xi1> to vector<16x1xi1>
      %60 = vector.broadcast %59 : vector<16x1xi1> to vector<16x32xi1>
      %61 = vector.shape_cast %57 : vector<1x32xf32> to vector<1x32xf32>
      %62 = vector.broadcast %61 : vector<1x32xf32> to vector<16x32xf32>
      %63 = vector.shape_cast %58 : vector<1x32xf32> to vector<1x32xf32>
      %64 = vector.broadcast %63 : vector<1x32xf32> to vector<16x32xf32>
      %65 = arith.select %60, %62, %64 : vector<16x32xi1>, vector<16x32xf32>
      %66 = arith.mulf %54, %65 : vector<16x32xf32>
      %cst_21 = arith.constant 1.000000e+00 : f32
      %67 = vector.broadcast %cst_21 : f32 to vector<16x32xf32>
      %68 = arith.subf %67, %65 : vector<16x32xf32>
      %69 = arith.mulf %46, %68 : vector<16x32xf32>
      %70 = arith.addf %66, %69 : vector<16x32xf32>
      %cst_22 = arith.constant dense<0.000000e+00> : vector<16xf32>
      %71 = vector.multi_reduction <add>, %70, %cst_22 [1] : vector<16x32xf32> to vector<16xf32>
      %72 = vector.shape_cast %71 : vector<16xf32> to vector<16x1xf32>
      %cst_23 = arith.constant 3.200000e+01 : f32
      %73 = vector.broadcast %cst_23 : f32 to vector<16x1xf32>
      %74 = arith.divf %72, %73 : vector<16x1xf32>
      %75 = vector.broadcast %74 : vector<16x1xf32> to vector<16x32xf32>
      %76 = arith.subf %70, %75 : vector<16x32xf32>
      %77 = arith.mulf %76, %76 : vector<16x32xf32>
      %cst_24 = arith.constant dense<0.000000e+00> : vector<16xf32>
      %78 = vector.multi_reduction <add>, %77, %cst_24 [1] : vector<16x32xf32> to vector<16xf32>
      %79 = vector.shape_cast %78 : vector<16xf32> to vector<16x1xf32>
      %cst_25 = arith.constant 3.200000e+01 : f32
      %80 = vector.broadcast %cst_25 : f32 to vector<16x1xf32>
      %81 = arith.divf %79, %80 : vector<16x1xf32>
      %c0_i32_26 = arith.constant 0 : i32
      %82 = vector.broadcast %c0_i32_26 : i32 to vector<16x1xi32>
      %83 = arith.cmpi eq, %47, %82 : vector<16x1xi32>
      %84 = vector.extract_strided_slice %18 {offsets = [2, 0], sizes = [1, 32], strides = [1, 1]} : vector<8x192xf32> to vector<1x32xf32>
      %85 = vector.extract_strided_slice %18 {offsets = [2, 32], sizes = [1, 32], strides = [1, 1]} : vector<8x192xf32> to vector<1x32xf32>
      %86 = vector.shape_cast %83 : vector<16x1xi1> to vector<16x1xi1>
      %87 = vector.broadcast %86 : vector<16x1xi1> to vector<16x32xi1>
      %88 = vector.shape_cast %84 : vector<1x32xf32> to vector<1x32xf32>
      %89 = vector.broadcast %88 : vector<1x32xf32> to vector<16x32xf32>
      %90 = vector.shape_cast %85 : vector<1x32xf32> to vector<1x32xf32>
      %91 = vector.broadcast %90 : vector<1x32xf32> to vector<16x32xf32>
      %92 = arith.select %87, %89, %91 : vector<16x32xi1>, vector<16x32xf32>
      %c0_i32_27 = arith.constant 0 : i32
      %93 = vector.broadcast %c0_i32_27 : i32 to vector<16x1xi32>
      %94 = arith.cmpi eq, %47, %93 : vector<16x1xi32>
      %95 = vector.extract_strided_slice %18 {offsets = [3, 0], sizes = [1, 32], strides = [1, 1]} : vector<8x192xf32> to vector<1x32xf32>
      %96 = vector.extract_strided_slice %18 {offsets = [3, 32], sizes = [1, 32], strides = [1, 1]} : vector<8x192xf32> to vector<1x32xf32>
      %97 = vector.shape_cast %94 : vector<16x1xi1> to vector<16x1xi1>
      %98 = vector.broadcast %97 : vector<16x1xi1> to vector<16x32xi1>
      %99 = vector.shape_cast %95 : vector<1x32xf32> to vector<1x32xf32>
      %100 = vector.broadcast %99 : vector<1x32xf32> to vector<16x32xf32>
      %101 = vector.shape_cast %96 : vector<1x32xf32> to vector<1x32xf32>
      %102 = vector.broadcast %101 : vector<1x32xf32> to vector<16x32xf32>
      %103 = arith.select %98, %100, %102 : vector<16x32xi1>, vector<16x32xf32>
      %104 = vector.broadcast %74 : vector<16x1xf32> to vector<16x32xf32>
      %105 = arith.subf %70, %104 : vector<16x32xf32>
      %cst_28 = arith.constant 9.99999974E-6 : f32
      %106 = vector.broadcast %cst_28 : f32 to vector<16x1xf32>
      %107 = arith.addf %81, %106 : vector<16x1xf32>
      %108 = math.rsqrt %107 : vector<16x1xf32>
      %109 = vector.broadcast %108 : vector<16x1xf32> to vector<16x32xf32>
      %110 = arith.mulf %105, %109 : vector<16x32xf32>
      %111 = arith.mulf %110, %92 : vector<16x32xf32>
      %112 = arith.addf %111, %103 : vector<16x32xf32>
      %c0_29 = arith.constant 0 : index
      %c0_30 = arith.constant 0 : index
      %113 = vector.load %arg13[%c0_29, %c0_30] : memref<16x32xf32, #tpu.memory_space<vmem>>, vector<16x32xf32>
      tpu.vector_store %arg13[%c0_29, %c0_30], %112 {strides = array<i32>} : memref<16x32xf32, #tpu.memory_space<vmem>>, vector<16x32xf32>,
    } else {
    }
    return
  }
  func.func @transform_0(%arg0: i32, %arg1: memref<3xi32, #tpu.memory_space<smem>>, %arg2: memref<3xi32, #tpu.memory_space<smem>>, %arg3: memref<3xi32, #tpu.memory_space<smem>>, %arg4: memref<3xi32, #tpu.memory_space<smem>>, %arg5: memref<3xi32, #tpu.memory_space<smem>>) -> (i32, i32) {
    %0 = arith.index_cast %arg0 : i32 to index
    %1 = memref.load %arg2[%0] : memref<3xi32, #tpu.memory_space<smem>>
    %c0_i32 = arith.constant 0 : i32
    %c0_i32_0 = arith.constant 0 : i32
    return %1, %c0_i32 : i32, i32
  }
  func.func @transform_1(%arg0: i32, %arg1: memref<3xi32, #tpu.memory_space<smem>>, %arg2: memref<3xi32, #tpu.memory_space<smem>>, %arg3: memref<3xi32, #tpu.memory_space<smem>>, %arg4: memref<3xi32, #tpu.memory_space<smem>>, %arg5: memref<3xi32, #tpu.memory_space<smem>>) -> (i32, i32) {
    %0 = arith.index_cast %arg0 : i32 to index
    %1 = memref.load %arg2[%0] : memref<3xi32, #tpu.memory_space<smem>>
    %c0_i32 = arith.constant 0 : i32
    %c0_i32_0 = arith.constant 0 : i32
    return %c0_i32, %1 : i32, i32
  }
  func.func @transform_2(%arg0: i32, %arg1: memref<3xi32, #tpu.memory_space<smem>>, %arg2: memref<3xi32, #tpu.memory_space<smem>>, %arg3: memref<3xi32, #tpu.memory_space<smem>>, %arg4: memref<3xi32, #tpu.memory_space<smem>>, %arg5: memref<3xi32, #tpu.memory_space<smem>>) -> (i32, i32) {
    %0 = arith.index_cast %arg0 : i32 to index
    %1 = memref.load %arg2[%0] : memref<3xi32, #tpu.memory_space<smem>>
    %c0_i32 = arith.constant 0 : i32
    %c0_i32_0 = arith.constant 0 : i32
    return %1, %c0_i32 : i32, i32
  }
  func.func @transform_3(%arg0: i32, %arg1: memref<3xi32, #tpu.memory_space<smem>>, %arg2: memref<3xi32, #tpu.memory_space<smem>>, %arg3: memref<3xi32, #tpu.memory_space<smem>>, %arg4: memref<3xi32, #tpu.memory_space<smem>>, %arg5: memref<3xi32, #tpu.memory_space<smem>>) -> (i32, i32) {
    %0 = arith.index_cast %arg0 : i32 to index
    %1 = memref.load %arg1[%0] : memref<3xi32, #tpu.memory_space<smem>>
    %c0_i32 = arith.constant 0 : i32
    %c0_i32_0 = arith.constant 0 : i32
    return %1, %c0_i32 : i32, i32
  }
  func.func @transform_4(%arg0: i32, %arg1: memref<3xi32, #tpu.memory_space<smem>>, %arg2: memref<3xi32, #tpu.memory_space<smem>>, %arg3: memref<3xi32, #tpu.memory_space<smem>>, %arg4: memref<3xi32, #tpu.memory_space<smem>>, %arg5: memref<3xi32, #tpu.memory_space<smem>>) -> (i32, i32) {
    %0 = arith.index_cast %arg0 : i32 to index
    %1 = memref.load %arg1[%0] : memref<3xi32, #tpu.memory_space<smem>>
    %c0_i32 = arith.constant 0 : i32
    %c0_i32_0 = arith.constant 0 : i32
    return %1, %c0_i32 : i32, i32
  }
  func.func @transform_5(%arg0: i32, %arg1: memref<3xi32, #tpu.memory_space<smem>>, %arg2: memref<3xi32, #tpu.memory_space<smem>>, %arg3: memref<3xi32, #tpu.memory_space<smem>>, %arg4: memref<3xi32, #tpu.memory_space<smem>>, %arg5: memref<3xi32, #tpu.memory_space<smem>>) -> (i32, i32) {
    %c0_i32 = arith.constant 0 : i32
    %c0_i32_0 = arith.constant 0 : i32
    %c0_i32_1 = arith.constant 0 : i32
    return %c0_i32, %c0_i32_0 : i32, i32
  }
  func.func @transform_6(%arg0: i32, %arg1: memref<3xi32, #tpu.memory_space<smem>>, %arg2: memref<3xi32, #tpu.memory_space<smem>>, %arg3: memref<3xi32, #tpu.memory_space<smem>>, %arg4: memref<3xi32, #tpu.memory_space<smem>>, %arg5: memref<3xi32, #tpu.memory_space<smem>>) -> (i32, i32) {
    %c0_i32 = arith.constant 0 : i32
    %c0_i32_0 = arith.constant 0 : i32
    %c0_i32_1 = arith.constant 0 : i32
    return %c0_i32, %c0_i32_0 : i32, i32
  }
  func.func @transform_7(%arg0: i32, %arg1: memref<3xi32, #tpu.memory_space<smem>>, %arg2: memref<3xi32, #tpu.memory_space<smem>>, %arg3: memref<3xi32, #tpu.memory_space<smem>>, %arg4: memref<3xi32, #tpu.memory_space<smem>>, %arg5: memref<3xi32, #tpu.memory_space<smem>>) -> (i32, i32) {
    %0 = arith.index_cast %arg0 : i32 to index
    %1 = memref.load %arg1[%0] : memref<3xi32, #tpu.memory_space<smem>>
    %c0_i32 = arith.constant 0 : i32
    %c0_i32_0 = arith.constant 0 : i32
    return %1, %c0_i32 : i32, i32
  }
}

</mosaic_0001>

<llo_original>
// kernel: general_conv_forward.1
$region0: #{general_conv_forward.1}
  #allocation0 [shape = 'u32[]', space=smem, size = 0x4, offset = 0x4, fixed_abs, tag = 'smem constant byte address 0x4 - core index']
  #allocation1 [shape = 'u32[72,128]{1,0:T(1,128)}', space=vmem, size = 0x9000, scoped, tag = 'internal scratch']
  #allocation2 [shape = 'f32[1,32]{1,0:T(1,128)}', space=vmem, size = 0x200, scoped, tag = 'scratch operand']
  #allocation3 [shape = 'f32[16,64]{1,0:T(8,128)}', space=vmem, size = 0x2000, scoped, tag = 'scratch operand']
  #allocation4 [shape = 's32[1]{0}', space=sflag, size = 0x4, scoped, tag = 'scoped memory for general_conv_forward.1']
  #allocation5 [shape = 'u8[512]{0}', space=smem, size = 0x200, scoped, tag = 'prefetched SMEM operand 0']
  #allocation6 [shape = 'u8[512]{0}', space=smem, size = 0x200, scoped, tag = 'prefetched SMEM operand 1']
  #allocation7 [shape = 'u8[512]{0}', space=smem, size = 0x200, scoped, tag = 'prefetched SMEM operand 2']
  #allocation8 [shape = 'u8[512]{0}', space=smem, size = 0x200, scoped, tag = 'prefetched SMEM operand 3']
  #allocation9 [shape = 'u8[512]{0}', space=smem, size = 0x200, scoped, tag = 'prefetched SMEM operand 4']
  %s0 = inlined_call_operand.vmem [shape: s32[3], index: 0, kind: input, shape index: {}]
  %s1 = inlined_call_operand.vmem [shape: s32[3], index: 1, kind: input, shape index: {}]
  %s2 = inlined_call_operand.vmem [shape: s32[3], index: 2, kind: input, shape index: {}]
  %s3 = inlined_call_operand.vmem [shape: s32[3], index: 3, kind: input, shape index: {}]
  %s4 = inlined_call_operand.vmem [shape: s32[3], index: 4, kind: input, shape index: {}]
  %s5 = inlined_call_operand.vmem [shape: s32[128,8], index: 5, kind: input, shape index: {}]
  %s6 = inlined_call_operand.vmem [shape: s32[1,128], index: 6, kind: input, shape index: {}]
  %s7 = inlined_call_operand.vmem [shape: bf16[128,64], index: 7, kind: input, shape index: {}]
  %s8 = inlined_call_operand.vmem [shape: f32[16,32], index: 8, kind: input, shape index: {}]
  %s9 = inlined_call_operand.vmem [shape: s32[16,1], index: 9, kind: input, shape index: {}]
  %s10 = inlined_call_operand.vmem [shape: bf16[64,512], index: 10, kind: input, shape index: {}]
  %s11 = inlined_call_operand.vmem [shape: f32[8,192], index: 11, kind: input, shape index: {}]
  %s12 = inlined_call_operand.hbm [shape: f32[16,32], index: 12, kind: output, shape index: {}]
  %s13 = sld [smem:[#allocation0]]
  $region73: #{general_conv_forward.1} parent=0
    _
  %s15 = ssub.s32 1, %s13
  %s16 = scalar_select 0, %s15, %s13
  %s18 = sshll.u32 %s0, 4
  %s19 = int_to_ptr.vmem [resolvable:$true] %s18
  %21 = dma.vmem_to_smem %s19, 16, [#allocation5], [#allocation4]
  %s23 = sshll.u32 %s1, 4
  %s24 = int_to_ptr.vmem [resolvable:$true] %s23
  %26 = dma.vmem_to_smem %s24, 16, [#allocation6], [#allocation4]
  %s28 = sshll.u32 %s2, 4
  %s29 = int_to_ptr.vmem [resolvable:$true] %s28
  %31 = dma.vmem_to_smem %s29, 16, [#allocation7], [#allocation4]
  %s33 = sshll.u32 %s3, 4
  %s34 = int_to_ptr.vmem [resolvable:$true] %s33
  %36 = dma.vmem_to_smem %s34, 16, [#allocation8], [#allocation4]
  %s38 = sshll.u32 %s4, 4
  %s39 = int_to_ptr.vmem [resolvable:$true] %s38
  %41 = dma.vmem_to_smem %s39, 16, [#allocation9], [#allocation4]
  %43 = dma.done [#allocation4], 80
  %44 = sfence
  $region1: #{general_conv_forward.1} parent=0
    #allocation10 [shape = 'u8[16384]{0}', space=vmem, size = 0x4000, scoped, tag = 'output window, operand 0']
    #allocation11 [shape = 's32[2]{0}', space=sflag, size = 0x8, scoped, tag = 'scoped memory for general_conv_forward.1']
    %45 = vsyncpa [#allocation11], 0
    %s46 = scalar_lea.sflag [#allocation11], 1
    %47 = vsyncpa %s46, 0
    loop: start=0, step=1, limit=5
    $region2: #{general_conv_forward.1} parent=1 // loop_pre_header
      _
    $region3: #{general_conv_forward.1} parent=1 // loop_header
      %s49 = sphi 0, %s53
      %p50 = scmp.ge.s32.totalorder %s49, 5
      %s61 = sphi 0, %s63
      %s64 = sphi 0, %s61
      %s65 = sphi 0, %s64
      %s81 = sphi 0, %s65
      %s89 = sphi 0, %s91
      %s92 = sphi 0, %s89
      %s93 = sphi 0, %s92
      %s109 = sphi 0, %s93
      %s117 = sphi 0, %s119
      %s120 = sphi 0, %s117
      %s121 = sphi 0, %s120
      %s137 = sphi 0, %s121
      %s145 = sphi 0, %s147
      %s148 = sphi 0, %s145
      %s149 = sphi 0, %s148
      %s165 = sphi 0, %s149
      %s173 = sphi 0, %s175
      %s176 = sphi 0, %s173
      %s177 = sphi 0, %s176
      %s193 = sphi 0, %s177
      %s197 = sphi 0, %s197
      %s199 = sphi 0, %s197
      %s200 = sphi 0, %s199
      %s214 = sphi 0, %s200
      %s218 = sphi 0, %s218
      %s220 = sphi 0, %s218
      %s221 = sphi 0, %s220
      %s235 = sphi 0, %s221
      %s243 = sphi 0, %s245
      %s246 = sphi 0, %s243
      %s247 = sphi 0, %s246
      %s263 = sphi 0, %s247
    $region4: #{general_conv_forward.1} parent=1 // loop_header_branch
      %52 = sbr.rel (%p50) target = $region8
    $region5: #{general_conv_forward.1} parent=1 // loop_body
      %s54 = ssub.s32 %s49, 1
      %s55 = ssub.s32 %s49, 2
      %s56 = sadd.s32 %s49, 1
      %s57 = sld [smem:[#allocation6 + %s49]]
      %s58 = sld [smem:[#allocation6 + %s56]]
      %s59 = ssub.s32 %s57, %s58
      %p60 = scmp.eq.s32.totalorder %s59, 0
      %s62 = sadd.s32 %s61, 1
      %s63 = scalar_select %p60, %s61, %s62
      %p66 = pneg %p60
      %p67 = scmp.eq.s32.totalorder %s49, 2
      %p68 = por %p66, %p67
      %p69 = scmp.ne.s32.totalorder %s61, %s64
      %p70 = scmp.eq.s32.totalorder %s49, 0
      %p71 = por %p69, %p70
      %p72 = scmp.ne.s32.totalorder %s61, %s64
      %p73 = scmp.eq.s32.totalorder %s54, 2
      %p74 = por %p72, %p73
      %p75 = scmp.ne.s32.totalorder %s64, %s65
      %p76 = scmp.eq.s32.totalorder %s54, 0
      %p77 = por %p75, %p76
      %p78 = scmp.ne.s32.totalorder %s64, %s65
      %p79 = scmp.eq.s32.totalorder %s55, 2
      %p80 = por %p78, %p79
      %p82 = scmp.ne.s32.totalorder %s65, %s81
      %p83 = scmp.eq.s32.totalorder %s55, 0
      %p84 = por %p82, %p83
      %s85 = sld [smem:[#allocation6 + %s49]]
      %s86 = sld [smem:[#allocation6 + %s56]]
      %s87 = ssub.s32 %s85, %s86
      %p88 = scmp.eq.s32.totalorder %s87, 0
      %s90 = sadd.s32 %s89, 1
      %s91 = scalar_select %p88, %s89, %s90
      %p94 = pneg %p88
      %p95 = scmp.eq.s32.totalorder %s49, 2
      %p96 = por %p94, %p95
      %p97 = scmp.ne.s32.totalorder %s89, %s92
      %p98 = scmp.eq.s32.totalorder %s49, 0
      %p99 = por %p97, %p98
      %p100 = scmp.ne.s32.totalorder %s89, %s92
      %p101 = scmp.eq.s32.totalorder %s54, 2
      %p102 = por %p100, %p101
      %p103 = scmp.ne.s32.totalorder %s92, %s93
      %p104 = scmp.eq.s32.totalorder %s54, 0
      %p105 = por %p103, %p104
      %p106 = scmp.ne.s32.totalorder %s92, %s93
      %p107 = scmp.eq.s32.totalorder %s55, 2
      %p108 = por %p106, %p107
      %p110 = scmp.ne.s32.totalorder %s93, %s109
      %p111 = scmp.eq.s32.totalorder %s55, 0
      %p112 = por %p110, %p111
      %s113 = sld [smem:[#allocation6 + %s49]]
      %s114 = sld [smem:[#allocation6 + %s56]]
      %s115 = ssub.s32 %s113, %s114
      %p116 = scmp.eq.s32.totalorder %s115, 0
      %s118 = sadd.s32 %s117, 1
      %s119 = scalar_select %p116, %s117, %s118
      %p122 = pneg %p116
      %p123 = scmp.eq.s32.totalorder %s49, 2
      %p124 = por %p122, %p123
      %p125 = scmp.ne.s32.totalorder %s117, %s120
      %p126 = scmp.eq.s32.totalorder %s49, 0
      %p127 = por %p125, %p126
      %p128 = scmp.ne.s32.totalorder %s117, %s120
      %p129 = scmp.eq.s32.totalorder %s54, 2
      %p130 = por %p128, %p129
      %p131 = scmp.ne.s32.totalorder %s120, %s121
      %p132 = scmp.eq.s32.totalorder %s54, 0
      %p133 = por %p131, %p132
      %p134 = scmp.ne.s32.totalorder %s120, %s121
      %p135 = scmp.eq.s32.totalorder %s55, 2
      %p136 = por %p134, %p135
      %p138 = scmp.ne.s32.totalorder %s121, %s137
      %p139 = scmp.eq.s32.totalorder %s55, 0
      %p140 = por %p138, %p139
      %s141 = sld [smem:[#allocation5 + %s49]]
      %s142 = sld [smem:[#allocation5 + %s56]]
      %s143 = ssub.s32 %s141, %s142
      %p144 = scmp.eq.s32.totalorder %s143, 0
      %s146 = sadd.s32 %s145, 1
      %s147 = scalar_select %p144, %s145, %s146
      %p150 = pneg %p144
      %p151 = scmp.eq.s32.totalorder %s49, 2
      %p152 = por %p150, %p151
      %p153 = scmp.ne.s32.totalorder %s145, %s148
      %p154 = scmp.eq.s32.totalorder %s49, 0
      %p155 = por %p153, %p154
      %p156 = scmp.ne.s32.totalorder %s145, %s148
      %p157 = scmp.eq.s32.totalorder %s54, 2
      %p158 = por %p156, %p157
      %p159 = scmp.ne.s32.totalorder %s148, %s149
      %p160 = scmp.eq.s32.totalorder %s54, 0
      %p161 = por %p159, %p160
      %p162 = scmp.ne.s32.totalorder %s148, %s149
      %p163 = scmp.eq.s32.totalorder %s55, 2
      %p164 = por %p162, %p163
      %p166 = scmp.ne.s32.totalorder %s149, %s165
      %p167 = scmp.eq.s32.totalorder %s55, 0
      %p168 = por %p166, %p167
      %s169 = sld [smem:[#allocation5 + %s49]]
      %s170 = sld [smem:[#allocation5 + %s56]]
      %s171 = ssub.s32 %s169, %s170
      %p172 = scmp.eq.s32.totalorder %s171, 0
      %s174 = sadd.s32 %s173, 1
      %s175 = scalar_select %p172, %s173, %s174
      %p178 = pneg %p172
      %p179 = scmp.eq.s32.totalorder %s49, 2
      %p180 = por %p178, %p179
      %p181 = scmp.ne.s32.totalorder %s173, %s176
      %p182 = scmp.eq.s32.totalorder %s49, 0
      %p183 = por %p181, %p182
      %p184 = scmp.ne.s32.totalorder %s173, %s176
      %p185 = scmp.eq.s32.totalorder %s54, 2
      %p186 = por %p184, %p185
      %p187 = scmp.ne.s32.totalorder %s176, %s177
      %p188 = scmp.eq.s32.totalorder %s54, 0
      %p189 = por %p187, %p188
      %p190 = scmp.ne.s32.totalorder %s176, %s177
      %p191 = scmp.eq.s32.totalorder %s55, 2
      %p192 = por %p190, %p191
      %p194 = scmp.ne.s32.totalorder %s177, %s193
      %p195 = scmp.eq.s32.totalorder %s55, 0
      %p196 = por %p194, %p195
      %s198 = sadd.s32 %s197, 1
      %p201 = scmp.eq.s32.totalorder %s49, 2
      %p202 = scmp.ne.s32.totalorder %s197, %s199
      %p203 = scmp.eq.s32.totalorder %s49, 0
      %p204 = por %p202, %p203
      %p205 = scmp.ne.s32.totalorder %s197, %s199
      %p206 = scmp.eq.s32.totalorder %s54, 2
      %p207 = por %p205, %p206
      %p208 = scmp.ne.s32.totalorder %s199, %s200
      %p209 = scmp.eq.s32.totalorder %s54, 0
      %p210 = por %p208, %p209
      %p211 = scmp.ne.s32.totalorder %s199, %s200
      %p212 = scmp.eq.s32.totalorder %s55, 2
      %p213 = por %p211, %p212
      %p215 = scmp.ne.s32.totalorder %s200, %s214
      %p216 = scmp.eq.s32.totalorder %s55, 0
      %p217 = por %p215, %p216
      %s219 = sadd.s32 %s218, 1
      %p222 = scmp.eq.s32.totalorder %s49, 2
      %p223 = scmp.ne.s32.totalorder %s218, %s220
      %p224 = scmp.eq.s32.totalorder %s49, 0
      %p225 = por %p223, %p224
      %p226 = scmp.ne.s32.totalorder %s218, %s220
      %p227 = scmp.eq.s32.totalorder %s54, 2
      %p228 = por %p226, %p227
      %p229 = scmp.ne.s32.totalorder %s220, %s221
      %p230 = scmp.eq.s32.totalorder %s54, 0
      %p231 = por %p229, %p230
      %p232 = scmp.ne.s32.totalorder %s220, %s221
      %p233 = scmp.eq.s32.totalorder %s55, 2
      %p234 = por %p232, %p233
      %p236 = scmp.ne.s32.totalorder %s221, %s235
      %p237 = scmp.eq.s32.totalorder %s55, 0
      %p238 = por %p236, %p237
      %s239 = sld [smem:[#allocation5 + %s49]]
      %s240 = sld [smem:[#allocation5 + %s56]]
      %s241 = ssub.s32 %s239, %s240
      %p242 = scmp.eq.s32.totalorder %s241, 0
      %s244 = sadd.s32 %s243, 1
      %s245 = scalar_select %p242, %s243, %s244
      %p248 = pneg %p242
      %p249 = scmp.eq.s32.totalorder %s49, 2
      %p250 = por %p248, %p249
      %p251 = scmp.ne.s32.totalorder %s243, %s246
      %p252 = scmp.eq.s32.totalorder %s49, 0
      %p253 = por %p251, %p252
      %p254 = scmp.ne.s32.totalorder %s243, %s246
      %p255 = scmp.eq.s32.totalorder %s54, 2
      %p256 = por %p254, %p255
      %p257 = scmp.ne.s32.totalorder %s246, %s247
      %p258 = scmp.eq.s32.totalorder %s54, 0
      %p259 = por %p257, %p258
      %p260 = scmp.ne.s32.totalorder %s246, %s247
      %p261 = scmp.eq.s32.totalorder %s55, 2
      %p262 = por %p260, %p261
      %p264 = scmp.ne.s32.totalorder %s247, %s263
      %p265 = scmp.eq.s32.totalorder %s55, 0
      %p266 = por %p264, %p265
      %p267 = scmp.le.s32.totalorder 1, %s49
      %p268 = scmp.lt.s32.totalorder %s49, 4
      %p269 = pnand %p267, %p268
      %p270 = pneg %p269
      // Predicated region
      $region9: #{general_conv_forward.1} parent=5 // pred_check
        _
      $region10: #{general_conv_forward.1} parent=5 // pred_check_branch
        %272 = sbr.rel (%p269) target = $region12
      $region11: #{general_conv_forward.1} parent=5 // pred_region
        %s273 = ssub.s32 %s49, 1
        // Predicated region
        $region13: #{general_conv_forward.1} parent=11 // pred_check
          %p274 = pneg %p210
        $region14: #{general_conv_forward.1} parent=11 // pred_check_branch
          %276 = sbr.rel (%p274) target = $region16
        $region15: #{general_conv_forward.1} parent=11 // pred_region
          _
        $region16: #{general_conv_forward.1} parent=11 // pred_fallthru
          _
        // Predicated region
        $region17: #{general_conv_forward.1} parent=11 // pred_check
          %p277 = pneg %p231
        $region18: #{general_conv_forward.1} parent=11 // pred_check_branch
          %279 = sbr.rel (%p277) target = $region20
        $region19: #{general_conv_forward.1} parent=11 // pred_region
          _
        $region20: #{general_conv_forward.1} parent=11 // pred_fallthru
          _
      $region12: #{general_conv_forward.1} parent=5 // pred_fallthru
        _
      %p280 = scmp.lt.s32.totalorder %s49, 3
      // Predicated region
      $region21: #{general_conv_forward.1} parent=5 // pred_check
        %p281 = pneg %p280
      $region22: #{general_conv_forward.1} parent=5 // pred_check_branch
        %283 = sbr.rel (%p281) target = $region24
      $region23: #{general_conv_forward.1} parent=5 // pred_region
        // Predicated region
        $region25: #{general_conv_forward.1} parent=23 // pred_check
          %p284 = pneg %p71
        $region26: #{general_conv_forward.1} parent=23 // pred_check_branch
          %286 = sbr.rel (%p284) target = $region28
        $region27: #{general_conv_forward.1} parent=23 // pred_region
          %s287 = sld [smem:[#allocation6 + %s49]]
          %s288 = smul.u32 16, %s287
          %p289 = scmp.lt.s32.totalorder %s288, 15
          %s290 = scalar_select %p289, %s288, 15
          %s291 = smul.addr %s290, 8
          %s292 = scalar_lea.vmem %s5, %s291
          %s293 = sld [smem:[#allocation6 + %s49]]
          %s294 = smul.u32 16, %s293
        $region28: #{general_conv_forward.1} parent=23 // pred_fallthru
          _
        // Predicated region
        $region29: #{general_conv_forward.1} parent=23 // pred_check
          %p295 = pneg %p99
        $region30: #{general_conv_forward.1} parent=23 // pred_check_branch
          %297 = sbr.rel (%p295) target = $region32
        $region31: #{general_conv_forward.1} parent=23 // pred_region
          %s298 = sld [smem:[#allocation6 + %s49]]
          %p299 = scmp.lt.s32.totalorder %s298, 0
          %s300 = scalar_select %p299, %s298, 0
          %s301 = scalar_lea.vmem %s6, %s300
          %s302 = sld [smem:[#allocation6 + %s49]]
        $region32: #{general_conv_forward.1} parent=23 // pred_fallthru
          _
        // Predicated region
        $region33: #{general_conv_forward.1} parent=23 // pred_check
          %p303 = pneg %p127
        $region34: #{general_conv_forward.1} parent=23 // pred_check_branch
          %305 = sbr.rel (%p303) target = $region36
        $region35: #{general_conv_forward.1} parent=23 // pred_region
          %s306 = sld [smem:[#allocation6 + %s49]]
          %s307 = smul.u32 16, %s306
          %p308 = scmp.lt.s32.totalorder %s307, 15
          %s309 = scalar_select %p308, %s307, 15
          %s310 = smul.addr %s309, 4
          %s311 = scalar_lea.vmem %s7, %s310
          %s312 = sld [smem:[#allocation6 + %s49]]
          %s313 = smul.u32 16, %s312
        $region36: #{general_conv_forward.1} parent=23 // pred_fallthru
          _
        // Predicated region
        $region37: #{general_conv_forward.1} parent=23 // pred_check
          %p314 = pneg %p155
        $region38: #{general_conv_forward.1} parent=23 // pred_check_branch
          %316 = sbr.rel (%p314) target = $region40
        $region39: #{general_conv_forward.1} parent=23 // pred_region
          %s317 = sld [smem:[#allocation5 + %s49]]
          %s318 = smul.u32 2, %s317
          %p319 = scmp.lt.s32.totalorder %s318, 1
          %s320 = scalar_select %p319, %s318, 1
          %s321 = smul.addr %s320, 8
          %s322 = scalar_lea.vmem %s8, %s321
          %s323 = sld [smem:[#allocation5 + %s49]]
          %s324 = smul.u32 2, %s323
        $region40: #{general_conv_forward.1} parent=23 // pred_fallthru
          _
        // Predicated region
        $region41: #{general_conv_forward.1} parent=23 // pred_check
          %p325 = pneg %p183
        $region42: #{general_conv_forward.1} parent=23 // pred_check_branch
          %327 = sbr.rel (%p325) target = $region44
        $region43: #{general_conv_forward.1} parent=23 // pred_region
          %s328 = sld [smem:[#allocation5 + %s49]]
          %s329 = smul.u32 2, %s328
          %p330 = scmp.lt.s32.totalorder %s329, 1
          %s331 = scalar_select %p330, %s329, 1
          %s332 = smul.addr %s331, 8
          %s333 = scalar_lea.vmem %s9, %s332
          %s334 = sld [smem:[#allocation5 + %s49]]
          %s335 = smul.u32 2, %s334
        $region44: #{general_conv_forward.1} parent=23 // pred_fallthru
          _
      $region24: #{general_conv_forward.1} parent=5 // pred_fallthru
        _
      %p336 = scmp.le.s32.totalorder 1, %s49
      %p337 = scmp.lt.s32.totalorder %s49, 4
      %p338 = pnand %p336, %p337
      %p339 = pneg %p338
      // Predicated region
      $region45: #{general_conv_forward.1} parent=5 // pred_check
        _
      $region46: #{general_conv_forward.1} parent=5 // pred_check_branch
        %341 = sbr.rel (%p338) target = $region48
      $region47: #{general_conv_forward.1} parent=5 // pred_region
        %s342 = ssub.s32 %s49, 1
        %s343 = sld [smem:[#allocation6 + %s54]]
        %s344 = smul.u32 16, %s343
        %p345 = scmp.lt.s32.totalorder %s344, 15
        %s346 = scalar_select %p345, %s344, 15
        %s347 = smul.addr %s346, 8
        %s348 = scalar_lea.vmem %s5, %s347
        %p349 = pneg %p77
        %p350 = pneg %p74
        %s351 = sld [smem:[#allocation6 + %s54]]
        %p352 = scmp.lt.s32.totalorder %s351, 0
        %s353 = scalar_select %p352, %s351, 0
        %s354 = scalar_lea.vmem %s6, %s353
        %p355 = pneg %p105
        %p356 = pneg %p102
        %s357 = sld [smem:[#allocation6 + %s54]]
        %s358 = smul.u32 16, %s357
        %p359 = scmp.lt.s32.totalorder %s358, 15
        %s360 = scalar_select %p359, %s358, 15
        %s361 = smul.addr %s360, 4
        %s362 = scalar_lea.vmem %s7, %s361
        %p363 = pneg %p133
        %p364 = pneg %p130
        %s365 = sld [smem:[#allocation5 + %s54]]
        %s366 = smul.u32 2, %s365
        %p367 = scmp.lt.s32.totalorder %s366, 1
        %s368 = scalar_select %p367, %s366, 1
        %s369 = smul.addr %s368, 8
        %s370 = scalar_lea.vmem %s8, %s369
        %p371 = pneg %p161
        %p372 = pneg %p158
        %s373 = sld [smem:[#allocation5 + %s54]]
        %s374 = smul.u32 2, %s373
        %p375 = scmp.lt.s32.totalorder %s374, 1
        %s376 = scalar_select %p375, %s374, 1
        %s377 = smul.addr %s376, 8
        %s378 = scalar_lea.vmem %s9, %s377
        %p379 = pneg %p189
        %p380 = pneg %p186
        %p381 = pneg %p210
        %p382 = pneg %p207
        %p383 = pneg %p231
        %p384 = pneg %p228
        %p385 = pneg %p259
        %p386 = pneg %p256
        %s387 = sand.u32 %s246, 1
        %s388 = scalar_lea.sflag [#allocation11], %s387
        %s389 = sand.u32 %s246, 1
        %s390 = smul.addr %s389, 16
        %s391 = scalar_lea.vmem [#allocation10], %s390
        %s392 = sld [smem:[#allocation6 + %s54]]
        %s393 = smul.u32 16, %s392
        %p394 = scmp.lt.s32.totalorder %s393, 15
        %s395 = scalar_select %p394, %s393, 15
        %s396 = smul.addr %s395, 8
        %s397 = scalar_lea.vmem %s5, %s396
        %s398 = sld [smem:[#allocation6 + %s54]]
        %s399 = smul.u32 16, %s398
        %s400 = sld [smem:[#allocation6 + %s54]]
        %p401 = scmp.lt.s32.totalorder %s400, 0
        %s402 = scalar_select %p401, %s400, 0
        %s403 = scalar_lea.vmem %s6, %s402
        %s404 = sld [smem:[#allocation6 + %s54]]
        %s405 = sld [smem:[#allocation6 + %s54]]
        %s406 = smul.u32 16, %s405
        %p407 = scmp.lt.s32.totalorder %s406, 15
        %s408 = scalar_select %p407, %s406, 15
        %s409 = smul.addr %s408, 4
        %s410 = scalar_lea.vmem %s7, %s409
        %s411 = sld [smem:[#allocation6 + %s54]]
        %s412 = smul.u32 16, %s411
        %s413 = sld [smem:[#allocation5 + %s54]]
        %s414 = smul.u32 2, %s413
        %p415 = scmp.lt.s32.totalorder %s414, 1
        %s416 = scalar_select %p415, %s414, 1
        %s417 = smul.addr %s416, 8
        %s418 = scalar_lea.vmem %s8, %s417
        %s419 = sld [smem:[#allocation5 + %s54]]
        %s420 = smul.u32 2, %s419
        %s421 = sld [smem:[#allocation5 + %s54]]
        %s422 = smul.u32 2, %s421
        %p423 = scmp.lt.s32.totalorder %s422, 1
        %s424 = scalar_select %p423, %s422, 1
        %s425 = smul.addr %s424, 8
        %s426 = scalar_lea.vmem %s9, %s425
        %s427 = sld [smem:[#allocation5 + %s54]]
        %s428 = smul.u32 2, %s427
        %s429 = sld [smem:[#allocation5 + %s54]]
        %s430 = smul.u32 2, %s429
        %s432 = sld [smem:[#allocation5 + %s54]]
        %s433 = sld [smem:[#allocation7 + %s54]]
        %p434 = scmp.eq.s32.totalorder %s433, 1
        // Predicated region
        $region49: #{general_conv_forward.1} parent=47 // pred_check
          %p435 = pneg %p434
        $region50: #{general_conv_forward.1} parent=47 // pred_check_branch
          %437 = sbr.rel (%p435) target = $region52
        $region51: #{general_conv_forward.1} parent=47 // pred_region
          %vm438 = vcmask 253952
          %439 = vst.msk [vmem:[#allocation2] sm:$0x1] %vm438, -1e+30
          %vm440 = vcmask 523264
          %441 = vst.msk [vmem:[#allocation3] sm:$0xff] %vm440, 0.0
          %442 = vst.msk [vmem:[#allocation3 + $0x8] sm:$0xff] %vm440, 0.0
        $region52: #{general_conv_forward.1} parent=47 // pred_fallthru
          _
        %s443 = sld [smem:[#allocation9 + %s54]]
        %p444 = scmp.eq.s32.totalorder %s443, 1
        // Predicated region
        $region53: #{general_conv_forward.1} parent=47 // pred_check
          %p445 = pneg %p444
        $region54: #{general_conv_forward.1} parent=47 // pred_check_branch
          %447 = sbr.rel (%p445) target = $region56
        $region55: #{general_conv_forward.1} parent=47 // pred_region
          %v448 = vld [vmem:[%s10] sm:$0xff]
          %v449 = vld [vmem:[%s10 + $0x8] sm:$0xff]
          %v450 = vld [vmem:[%s10 + $0x10] sm:$0xff]
          %v451 = vld [vmem:[%s10 + $0x18] sm:$0xff]
          %v452 = vld [vmem:[%s10 + $0x20] sm:$0xff]
          %v453 = vld [vmem:[%s10 + $0x28] sm:$0xff]
          %v454 = vld [vmem:[%s10 + $0x30] sm:$0xff]
          %v455 = vld [vmem:[%s10 + $0x38] sm:$0xff]
          %v456 = vld [vmem:[%s10 + $0x40] sm:$0xff]
          %v457 = vld [vmem:[%s10 + $0x48] sm:$0xff]
          %v458 = vld [vmem:[%s10 + $0x50] sm:$0xff]
          %v459 = vld [vmem:[%s10 + $0x58] sm:$0xff]
          %v460 = vld [vmem:[%s10 + $0x60] sm:$0xff]
          %v461 = vld [vmem:[%s10 + $0x68] sm:$0xff]
          %v462 = vld [vmem:[%s10 + $0x70] sm:$0xff]
          %v463 = vld [vmem:[%s10 + $0x78] sm:$0xff]
          %v464 = vld [vmem:[%s11] sm:$0xff]
          %v465 = vld [vmem:[%s11 + $0x8] sm:$0xff]
          %v466 = vld [vmem:[%s397] sm:$0xff]
          %v467 = vld [vmem:[%s397 + $0x8] sm:$0xff]
          %v468 = vld [vmem:[%s397 + $0x10] sm:$0xff]
          %v469 = vld [vmem:[%s397 + $0x18] sm:$0xff]
          %v470 = vld [vmem:[%s397 + $0x20] sm:$0xff]
          %v471 = vld [vmem:[%s397 + $0x28] sm:$0xff]
          %v472 = vld [vmem:[%s397 + $0x30] sm:$0xff]
          %v473 = vld [vmem:[%s397 + $0x38] sm:$0xff]
          %v474 = vld [vmem:[%s397 + $0x40] sm:$0xff]
          %v475 = vld [vmem:[%s397 + $0x48] sm:$0xff]
          %v476 = vld [vmem:[%s397 + $0x50] sm:$0xff]
          %v477 = vld [vmem:[%s397 + $0x58] sm:$0xff]
          %v478 = vld [vmem:[%s397 + $0x60] sm:$0xff]
          %v479 = vld [vmem:[%s397 + $0x68] sm:$0xff]
          %v480 = vld [vmem:[%s397 + $0x70] sm:$0xff]
          %v481 = vld [vmem:[%s397 + $0x78] sm:$0xff]
          %v482 = vld [vmem:[%s410] sm:$0xf]
          %v483 = vld [vmem:[%s410 + $0x4] sm:$0xf]
          %v484 = vld [vmem:[%s410 + $0x8] sm:$0xf]
          %v485 = vld [vmem:[%s410 + $0xc] sm:$0xf]
          %v486 = vld [vmem:[%s410 + $0x10] sm:$0xf]
          %v487 = vld [vmem:[%s410 + $0x14] sm:$0xf]
          %v488 = vld [vmem:[%s410 + $0x18] sm:$0xf]
          %v489 = vld [vmem:[%s410 + $0x1c] sm:$0xf]
          %v490 = vld [vmem:[%s410 + $0x20] sm:$0xf]
          %v491 = vld [vmem:[%s410 + $0x24] sm:$0xf]
          %v492 = vld [vmem:[%s410 + $0x28] sm:$0xf]
          %v493 = vld [vmem:[%s410 + $0x2c] sm:$0xf]
          %v494 = vld [vmem:[%s410 + $0x30] sm:$0xf]
          %v495 = vld [vmem:[%s410 + $0x34] sm:$0xf]
          %v496 = vld [vmem:[%s410 + $0x38] sm:$0xf]
          %v497 = vld [vmem:[%s410 + $0x3c] sm:$0xf]
          %v498 = vperm.slane %v464, 0
          %v499 = vperm.slane %v465, 0
          %v516 = vunpack.c.l.b16 %v482
          %v517 = vunpack.c.l.b16 %v483
          %v518 = vunpack.c.l.b16 %v484
          %v519 = vunpack.c.l.b16 %v485
          %v520 = vunpack.c.l.b16 %v486
          %v521 = vunpack.c.l.b16 %v487
          %v522 = vunpack.c.l.b16 %v488
          %v523 = vunpack.c.l.b16 %v489
          %v524 = vunpack.c.l.b16 %v490
          %v525 = vunpack.c.l.b16 %v491
          %v526 = vunpack.c.l.b16 %v492
          %v527 = vunpack.c.l.b16 %v493
          %v528 = vunpack.c.l.b16 %v494
          %v529 = vunpack.c.l.b16 %v495
          %v530 = vunpack.c.l.b16 %v496
          %v531 = vunpack.c.l.b16 %v497
          %v532 = vpack.c.b16 %v517, %v516
          %v533 = vpack.c.b16 %v519, %v518
          %v534 = vpack.c.b16 %v521, %v520
          %v535 = vpack.c.b16 %v523, %v522
          %v536 = vpack.c.b16 %v525, %v524
          %v537 = vpack.c.b16 %v527, %v526
          %v538 = vpack.c.b16 %v529, %v528
          %v539 = vpack.c.b16 %v531, %v530
          %v548 = vunpack.c.l.b16 %v448
          %v549 = vunpack.c.h.b16 %v448
          %v550 = vunpack.c.l.b16 %v450
          %v551 = vunpack.c.h.b16 %v450
          %v552 = vunpack.c.l.b16 %v452
          %v553 = vunpack.c.h.b16 %v452
          %v554 = vunpack.c.l.b16 %v454
          %v555 = vunpack.c.h.b16 %v454
          %v556 = vunpack.c.l.b16 %v456
          %v557 = vunpack.c.h.b16 %v456
          %v558 = vunpack.c.l.b16 %v458
          %v559 = vunpack.c.h.b16 %v458
          %v560 = vunpack.c.l.b16 %v460
          %v561 = vunpack.c.h.b16 %v460
          %v562 = vunpack.c.l.b16 %v462
          %v563 = vunpack.c.h.b16 %v462
          %v564 = vpack.c.b16 %v550, %v548
          %v565 = vpack.c.b16 %v551, %v549
          %v566 = vpack.c.b16 %v554, %v552
          %v567 = vpack.c.b16 %v555, %v553
          %v568 = vpack.c.b16 %v558, %v556
          %v569 = vpack.c.b16 %v559, %v557
          %v570 = vpack.c.b16 %v562, %v560
          %v571 = vpack.c.b16 %v563, %v561
          %vm580 = vcmask 523264
          %v582 = vsel %vm580, %v532, 0
          %v585 = vsel %vm580, %v533, 0
          %v588 = vsel %vm580, %v534, 0
          %v591 = vsel %vm580, %v535, 0
          %v594 = vsel %vm580, %v536, 0
          %v597 = vsel %vm580, %v537, 0
          %v600 = vsel %vm580, %v538, 0
          %v603 = vsel %vm580, %v539, 0
          %605 = vmatpush.bf16.msra.mxu0 0
          %606 = vmatpush.bf16.msra.mxu0 0
          %607 = vmatpush.bf16.msra.mxu0 0
          %608 = vmatpush.bf16.msra.mxu0 0
          %609 = vmatpush.bf16.msra.mxu0 %v570
          %610 = vmatpush.bf16.msra.mxu0 %v568
          %611 = vmatpush.bf16.msra.mxu0 %v566
          %612 = vmatpush.bf16.msra.mxu0 %v564
          %613 = vmatmul.bf16.gmra.mxu0 %v582
          %v614 = vpop.f32.mrf.mxu0
          %v615 = vadd.f32 %v498, %v614
          %v616 = vpop.f32.mrf.mxu0
          %v617 = vadd.f32 %v498, %v616
          %618 = vmatmul.bf16.gmra.mxu0 %v585
          %v619 = vpop.f32.mrf.mxu0
          %v620 = vadd.f32 %v498, %v619
          %v621 = vpop.f32.mrf.mxu0
          %v622 = vadd.f32 %v498, %v621
          %623 = vmatmul.bf16.gmra.mxu0 %v588
          %v624 = vpop.f32.mrf.mxu0
          %v625 = vadd.f32 %v498, %v624
          %v626 = vpop.f32.mrf.mxu0
          %v627 = vadd.f32 %v498, %v626
          %628 = vmatmul.bf16.gmra.mxu0 %v591
          %v629 = vpop.f32.mrf.mxu0
          %v630 = vadd.f32 %v498, %v629
          %v631 = vpop.f32.mrf.mxu0
          %v632 = vadd.f32 %v498, %v631
          %633 = vmatmul.bf16.gmra.mxu0 %v594
          %v634 = vpop.f32.mrf.mxu0
          %v635 = vadd.f32 %v498, %v634
          %v636 = vpop.f32.mrf.mxu0
          %v637 = vadd.f32 %v498, %v636
          %638 = vmatmul.bf16.gmra.mxu0 %v597
          %v639 = vpop.f32.mrf.mxu0
          %v640 = vadd.f32 %v498, %v639
          %v641 = vpop.f32.mrf.mxu0
          %v642 = vadd.f32 %v498, %v641
          %643 = vmatmul.bf16.gmra.mxu0 %v600
          %v644 = vpop.f32.mrf.mxu0
          %v645 = vadd.f32 %v498, %v644
          %v646 = vpop.f32.mrf.mxu0
          %v647 = vadd.f32 %v498, %v646
          %648 = vmatmul.bf16.gmra.mxu0 %v603
          %v649 = vpop.f32.mrf.mxu0
          %v650 = vadd.f32 %v498, %v649
          %v651 = vpop.f32.mrf.mxu0
          %v652 = vadd.f32 %v498, %v651
          %653 = vdwg.mxu0
          %654 = vmatpush.bf16.msra.mxu0 0
          %655 = vmatpush.bf16.msra.mxu0 0
          %656 = vmatpush.bf16.msra.mxu0 0
          %657 = vmatpush.bf16.msra.mxu0 0
          %658 = vmatpush.bf16.msra.mxu0 %v571
          %659 = vmatpush.bf16.msra.mxu0 %v569
          %660 = vmatpush.bf16.msra.mxu0 %v567
          %661 = vmatpush.bf16.msra.mxu0 %v565
          %662 = vmatmul.bf16.gmra.mxu0 %v582
          %v663 = vpop.f32.mrf.mxu0
          %v664 = vadd.f32 %v499, %v663
          %v665 = vpop.f32.mrf.mxu0
          %v666 = vadd.f32 %v499, %v665
          %667 = vmatmul.bf16.gmra.mxu0 %v585
          %v668 = vpop.f32.mrf.mxu0
          %v669 = vadd.f32 %v499, %v668
          %v670 = vpop.f32.mrf.mxu0
          %v671 = vadd.f32 %v499, %v670
          %672 = vmatmul.bf16.gmra.mxu0 %v588
          %v673 = vpop.f32.mrf.mxu0
          %v674 = vadd.f32 %v499, %v673
          %v675 = vpop.f32.mrf.mxu0
          %v676 = vadd.f32 %v499, %v675
          %677 = vmatmul.bf16.gmra.mxu0 %v591
          %v678 = vpop.f32.mrf.mxu0
          %v679 = vadd.f32 %v499, %v678
          %v680 = vpop.f32.mrf.mxu0
          %v681 = vadd.f32 %v499, %v680
          %682 = vmatmul.bf16.gmra.mxu0 %v594
          %v683 = vpop.f32.mrf.mxu0
          %v684 = vadd.f32 %v499, %v683
          %v685 = vpop.f32.mrf.mxu0
          %v686 = vadd.f32 %v499, %v685
          %687 = vmatmul.bf16.gmra.mxu0 %v597
          %v688 = vpop.f32.mrf.mxu0
          %v689 = vadd.f32 %v499, %v688
          %v690 = vpop.f32.mrf.mxu0
          %v691 = vadd.f32 %v499, %v690
          %692 = vmatmul.bf16.gmra.mxu0 %v600
          %v693 = vpop.f32.mrf.mxu0
          %v694 = vadd.f32 %v499, %v693
          %v695 = vpop.f32.mrf.mxu0
          %v696 = vadd.f32 %v499, %v695
          %697 = vmatmul.bf16.gmra.mxu0 %v603
          %v698 = vpop.f32.mrf.mxu0
          %v699 = vadd.f32 %v499, %v698
          %v700 = vpop.f32.mrf.mxu0
          %v701 = vadd.f32 %v499, %v700
          %702 = vdwg.mxu0
          %vm703 = vcmp.eq.s32.totalorder %v466, 0
          %vm704 = vcmp.eq.s32.totalorder %v467, 0
          %vm705 = vcmp.eq.s32.totalorder %v468, 0
          %vm706 = vcmp.eq.s32.totalorder %v469, 0
          %vm707 = vcmp.eq.s32.totalorder %v470, 0
          %vm708 = vcmp.eq.s32.totalorder %v471, 0
          %vm709 = vcmp.eq.s32.totalorder %v472, 0
          %vm710 = vcmp.eq.s32.totalorder %v473, 0
          %vm711 = vcmp.eq.s32.totalorder %v474, 0
          %vm712 = vcmp.eq.s32.totalorder %v475, 0
          %vm713 = vcmp.eq.s32.totalorder %v476, 0
          %vm714 = vcmp.eq.s32.totalorder %v477, 0
          %vm715 = vcmp.eq.s32.totalorder %v478, 0
          %vm716 = vcmp.eq.s32.totalorder %v479, 0
          %vm717 = vcmp.eq.s32.totalorder %v480, 0
          %vm718 = vcmp.eq.s32.totalorder %v481, 0
          %v719 = vsel %vm703, 1, 0
          %v720 = vsel %vm704, 1, 0
          %v721 = vsel %vm705, 1, 0
          %v722 = vsel %vm706, 1, 0
          %v723 = vsel %vm707, 1, 0
          %v724 = vsel %vm708, 1, 0
          %v725 = vsel %vm709, 1, 0
          %v726 = vsel %vm710, 1, 0
          %v727 = vsel %vm711, 1, 0
          %v728 = vsel %vm712, 1, 0
          %v729 = vsel %vm713, 1, 0
          %v730 = vsel %vm714, 1, 0
          %v731 = vsel %vm715, 1, 0
          %v732 = vsel %vm716, 1, 0
          %v733 = vsel %vm717, 1, 0
          %v734 = vsel %vm718, 1, 0
          %735 = vset.pattern.permute.xlu0 0
          %736 = vperm.xlu0 %735, %v719
          %v737 = vpop.permute.xlu0 %736
          %738 = vset.pattern.permute.xlu0 0
          %739 = vperm.xlu0 %738, %v720
          %v740 = vpop.permute.xlu0 %739
          %741 = vset.pattern.permute.xlu0 0
          %742 = vperm.xlu0 %741, %v721
          %v743 = vpop.permute.xlu0 %742
          %744 = vset.pattern.permute.xlu0 0
          %745 = vperm.xlu0 %744, %v722
          %v746 = vpop.permute.xlu0 %745
          %747 = vset.pattern.permute.xlu0 0
          %748 = vperm.xlu0 %747, %v723
          %v749 = vpop.permute.xlu0 %748
          %750 = vset.pattern.permute.xlu0 0
          %751 = vperm.xlu0 %750, %v724
          %v752 = vpop.permute.xlu0 %751
          %753 = vset.pattern.permute.xlu0 0
          %754 = vperm.xlu0 %753, %v725
          %v755 = vpop.permute.xlu0 %754
          %756 = vset.pattern.permute.xlu0 0
          %757 = vperm.xlu0 %756, %v726
          %v758 = vpop.permute.xlu0 %757
          %759 = vset.pattern.permute.xlu0 0
          %760 = vperm.xlu0 %759, %v727
          %v761 = vpop.permute.xlu0 %760
          %762 = vset.pattern.permute.xlu0 0
          %763 = vperm.xlu0 %762, %v728
          %v764 = vpop.permute.xlu0 %763
          %765 = vset.pattern.permute.xlu0 0
          %766 = vperm.xlu0 %765, %v729
          %v767 = vpop.permute.xlu0 %766
          %768 = vset.pattern.permute.xlu0 0
          %769 = vperm.xlu0 %768, %v730
          %v770 = vpop.permute.xlu0 %769
          %771 = vset.pattern.permute.xlu0 0
          %772 = vperm.xlu0 %771, %v731
          %v773 = vpop.permute.xlu0 %772
          %774 = vset.pattern.permute.xlu0 0
          %775 = vperm.xlu0 %774, %v732
          %v776 = vpop.permute.xlu0 %775
          %777 = vset.pattern.permute.xlu0 0
          %778 = vperm.xlu0 %777, %v733
          %v779 = vpop.permute.xlu0 %778
          %780 = vset.pattern.permute.xlu0 0
          %781 = vperm.xlu0 %780, %v734
          %v782 = vpop.permute.xlu0 %781
          %vm783 = vcmp.eq.s32.totalorder %v737, 1
          %vm784 = vcmp.eq.s32.totalorder %v740, 1
          %vm785 = vcmp.eq.s32.totalorder %v743, 1
          %vm786 = vcmp.eq.s32.totalorder %v746, 1
          %vm787 = vcmp.eq.s32.totalorder %v749, 1
          %vm788 = vcmp.eq.s32.totalorder %v752, 1
          %vm789 = vcmp.eq.s32.totalorder %v755, 1
          %vm790 = vcmp.eq.s32.totalorder %v758, 1
          %vm791 = vcmp.eq.s32.totalorder %v761, 1
          %vm792 = vcmp.eq.s32.totalorder %v764, 1
          %vm793 = vcmp.eq.s32.totalorder %v767, 1
          %vm794 = vcmp.eq.s32.totalorder %v770, 1
          %vm795 = vcmp.eq.s32.totalorder %v773, 1
          %vm796 = vcmp.eq.s32.totalorder %v776, 1
          %vm797 = vcmp.eq.s32.totalorder %v779, 1
          %vm798 = vcmp.eq.s32.totalorder %v782, 1
          %815 = vrot.lane.b32.xlu0 %v615, 64
          %v816 = vpop.permute.xlu0 %815
          %817 = vrot.lane.b32.xlu0 %v617, 64
          %v818 = vpop.permute.xlu0 %817
          %819 = vrot.lane.b32.xlu0 %v620, 64
          %v820 = vpop.permute.xlu0 %819
          %821 = vrot.lane.b32.xlu0 %v622, 64
          %v822 = vpop.permute.xlu0 %821
          %823 = vrot.lane.b32.xlu0 %v625, 64
          %v824 = vpop.permute.xlu0 %823
          %825 = vrot.lane.b32.xlu0 %v627, 64
          %v826 = vpop.permute.xlu0 %825
          %827 = vrot.lane.b32.xlu0 %v630, 64
          %v828 = vpop.permute.xlu0 %827
          %829 = vrot.lane.b32.xlu0 %v632, 64
          %v830 = vpop.permute.xlu0 %829
          %831 = vrot.lane.b32.xlu0 %v635, 64
          %v832 = vpop.permute.xlu0 %831
          %833 = vrot.lane.b32.xlu0 %v637, 64
          %v834 = vpop.permute.xlu0 %833
          %835 = vrot.lane.b32.xlu0 %v640, 64
          %v836 = vpop.permute.xlu0 %835
          %837 = vrot.lane.b32.xlu0 %v642, 64
          %v838 = vpop.permute.xlu0 %837
          %839 = vrot.lane.b32.xlu0 %v645, 64
          %v840 = vpop.permute.xlu0 %839
          %841 = vrot.lane.b32.xlu0 %v647, 64
          %v842 = vpop.permute.xlu0 %841
          %843 = vrot.lane.b32.xlu0 %v650, 64
          %v844 = vpop.permute.xlu0 %843
          %845 = vrot.lane.b32.xlu0 %v652, 64
          %v846 = vpop.permute.xlu0 %845
          %v863 = vsel %vm783, %v615, %v816
          %v864 = vsel %vm784, %v617, %v818
          %v865 = vsel %vm785, %v620, %v820
          %v866 = vsel %vm786, %v622, %v822
          %v867 = vsel %vm787, %v625, %v824
          %v868 = vsel %vm788, %v627, %v826
          %v869 = vsel %vm789, %v630, %v828
          %v870 = vsel %vm790, %v632, %v830
          %v871 = vsel %vm791, %v635, %v832
          %v872 = vsel %vm792, %v637, %v834
          %v873 = vsel %vm793, %v640, %v836
          %v874 = vsel %vm794, %v642, %v838
          %v875 = vsel %vm795, %v645, %v840
          %v876 = vsel %vm796, %v647, %v842
          %v877 = vsel %vm797, %v650, %v844
          %v878 = vsel %vm798, %v652, %v846
          %879 = vset.pattern.permute.xlu0 1
          %880 = vperm.xlu0 %879, %v719
          %v881 = vpop.permute.xlu0 %880
          %882 = vset.pattern.permute.xlu0 1
          %883 = vperm.xlu0 %882, %v720
          %v884 = vpop.permute.xlu0 %883
          %885 = vset.pattern.permute.xlu0 1
          %886 = vperm.xlu0 %885, %v721
          %v887 = vpop.permute.xlu0 %886
          %888 = vset.pattern.permute.xlu0 1
          %889 = vperm.xlu0 %888, %v722
          %v890 = vpop.permute.xlu0 %889
          %891 = vset.pattern.permute.xlu0 1
          %892 = vperm.xlu0 %891, %v723
          %v893 = vpop.permute.xlu0 %892
          %894 = vset.pattern.permute.xlu0 1
          %895 = vperm.xlu0 %894, %v724
          %v896 = vpop.permute.xlu0 %895
          %897 = vset.pattern.permute.xlu0 1
          %898 = vperm.xlu0 %897, %v725
          %v899 = vpop.permute.xlu0 %898
          %900 = vset.pattern.permute.xlu0 1
          %901 = vperm.xlu0 %900, %v726
          %v902 = vpop.permute.xlu0 %901
          %903 = vset.pattern.permute.xlu0 1
          %904 = vperm.xlu0 %903, %v727
          %v905 = vpop.permute.xlu0 %904
          %906 = vset.pattern.permute.xlu0 1
          %907 = vperm.xlu0 %906, %v728
          %v908 = vpop.permute.xlu0 %907
          %909 = vset.pattern.permute.xlu0 1
          %910 = vperm.xlu0 %909, %v729
          %v911 = vpop.permute.xlu0 %910
          %912 = vset.pattern.permute.xlu0 1
          %913 = vperm.xlu0 %912, %v730
          %v914 = vpop.permute.xlu0 %913
          %915 = vset.pattern.permute.xlu0 1
          %916 = vperm.xlu0 %915, %v731
          %v917 = vpop.permute.xlu0 %916
          %918 = vset.pattern.permute.xlu0 1
          %919 = vperm.xlu0 %918, %v732
          %v920 = vpop.permute.xlu0 %919
          %921 = vset.pattern.permute.xlu0 1
          %922 = vperm.xlu0 %921, %v733
          %v923 = vpop.permute.xlu0 %922
          %924 = vset.pattern.permute.xlu0 1
          %925 = vperm.xlu0 %924, %v734
          %v926 = vpop.permute.xlu0 %925
          %vm927 = vcmp.eq.s32.totalorder %v881, 1
          %vm928 = vcmp.eq.s32.totalorder %v884, 1
          %vm929 = vcmp.eq.s32.totalorder %v887, 1
          %vm930 = vcmp.eq.s32.totalorder %v890, 1
          %vm931 = vcmp.eq.s32.totalorder %v893, 1
          %vm932 = vcmp.eq.s32.totalorder %v896, 1
          %vm933 = vcmp.eq.s32.totalorder %v899, 1
          %vm934 = vcmp.eq.s32.totalorder %v902, 1
          %vm935 = vcmp.eq.s32.totalorder %v905, 1
          %vm936 = vcmp.eq.s32.totalorder %v908, 1
          %vm937 = vcmp.eq.s32.totalorder %v911, 1
          %vm938 = vcmp.eq.s32.totalorder %v914, 1
          %vm939 = vcmp.eq.s32.totalorder %v917, 1
          %vm940 = vcmp.eq.s32.totalorder %v920, 1
          %vm941 = vcmp.eq.s32.totalorder %v923, 1
          %vm942 = vcmp.eq.s32.totalorder %v926, 1
          %959 = vrot.lane.b32.xlu0 %v664, 96
          %v960 = vpop.permute.xlu0 %959
          %961 = vrot.lane.b32.xlu0 %v666, 96
          %v962 = vpop.permute.xlu0 %961
          %963 = vrot.lane.b32.xlu0 %v669, 96
          %v964 = vpop.permute.xlu0 %963
          %965 = vrot.lane.b32.xlu0 %v671, 96
          %v966 = vpop.permute.xlu0 %965
          %967 = vrot.lane.b32.xlu0 %v674, 96
          %v968 = vpop.permute.xlu0 %967
          %969 = vrot.lane.b32.xlu0 %v676, 96
          %v970 = vpop.permute.xlu0 %969
          %971 = vrot.lane.b32.xlu0 %v679, 96
          %v972 = vpop.permute.xlu0 %971
          %973 = vrot.lane.b32.xlu0 %v681, 96
          %v974 = vpop.permute.xlu0 %973
          %975 = vrot.lane.b32.xlu0 %v684, 96
          %v976 = vpop.permute.xlu0 %975
          %977 = vrot.lane.b32.xlu0 %v686, 96
          %v978 = vpop.permute.xlu0 %977
          %979 = vrot.lane.b32.xlu0 %v689, 96
          %v980 = vpop.permute.xlu0 %979
          %981 = vrot.lane.b32.xlu0 %v691, 96
          %v982 = vpop.permute.xlu0 %981
          %983 = vrot.lane.b32.xlu0 %v694, 96
          %v984 = vpop.permute.xlu0 %983
          %985 = vrot.lane.b32.xlu0 %v696, 96
          %v986 = vpop.permute.xlu0 %985
          %987 = vrot.lane.b32.xlu0 %v699, 96
          %v988 = vpop.permute.xlu0 %987
          %989 = vrot.lane.b32.xlu0 %v701, 96
          %v990 = vpop.permute.xlu0 %989
          %v1007 = vsel %vm927, %v664, %v960
          %v1008 = vsel %vm928, %v666, %v962
          %v1009 = vsel %vm929, %v669, %v964
          %v1010 = vsel %vm930, %v671, %v966
          %v1011 = vsel %vm931, %v674, %v968
          %v1012 = vsel %vm932, %v676, %v970
          %v1013 = vsel %vm933, %v679, %v972
          %v1014 = vsel %vm934, %v681, %v974
          %v1015 = vsel %vm935, %v684, %v976
          %v1016 = vsel %vm936, %v686, %v978
          %v1017 = vsel %vm937, %v689, %v980
          %v1018 = vsel %vm938, %v691, %v982
          %v1019 = vsel %vm939, %v694, %v984
          %v1020 = vsel %vm940, %v696, %v986
          %v1021 = vsel %vm941, %v699, %v988
          %v1022 = vsel %vm942, %v701, %v990
          %v1023 = vpack.c.bf16 %v864, %v863
          %v1024 = vpack.c.bf16 %v866, %v865
          %v1025 = vpack.c.bf16 %v868, %v867
          %v1026 = vpack.c.bf16 %v870, %v869
          %v1027 = vpack.c.bf16 %v872, %v871
          %v1028 = vpack.c.bf16 %v874, %v873
          %v1029 = vpack.c.bf16 %v876, %v875
          %v1030 = vpack.c.bf16 %v878, %v877
          %v1039 = vunpack.c.l.b16 %v449
          %v1040 = vunpack.c.l.b16 %v451
          %v1041 = vunpack.c.l.b16 %v453
          %v1042 = vunpack.c.l.b16 %v455
          %v1043 = vunpack.c.l.b16 %v457
          %v1044 = vunpack.c.l.b16 %v459
          %v1045 = vunpack.c.l.b16 %v461
          %v1046 = vunpack.c.l.b16 %v463
          %v1047 = vpack.c.b16 %v1040, %v1039
          %v1048 = vpack.c.b16 %v1042, %v1041
          %v1049 = vpack.c.b16 %v1044, %v1043
          %v1050 = vpack.c.b16 %v1046, %v1045
          %v1056 = vsel %vm580, %v1023, 0
          %v1059 = vsel %vm580, %v1024, 0
          %v1062 = vsel %vm580, %v1025, 0
          %v1065 = vsel %vm580, %v1026, 0
          %v1068 = vsel %vm580, %v1027, 0
          %v1071 = vsel %vm580, %v1028, 0
          %v1074 = vsel %vm580, %v1029, 0
          %v1077 = vsel %vm580, %v1030, 0
          %1079 = vmatpush.bf16.msra.mxu0 0
          %1080 = vmatpush.bf16.msra.mxu0 0
          %1081 = vmatpush.bf16.msra.mxu0 0
          %1082 = vmatpush.bf16.msra.mxu0 0
          %1083 = vmatpush.bf16.msra.mxu0 %v1050
          %1084 = vmatpush.bf16.msra.mxu0 %v1049
          %1085 = vmatpush.bf16.msra.mxu0 %v1048
          %1086 = vmatpush.bf16.msra.mxu0 %v1047
          %1087 = vmatmul.bf16.gmra.mxu0 %v1056
          %v1088 = vpop.f32.mrf.mxu0
          %v1089 = vadd.f32 0.0, %v1088
          %v1090 = vpop.f32.mrf.mxu0
          %v1091 = vadd.f32 0.0, %v1090
          %1092 = vmatmul.bf16.gmra.mxu0 %v1059
          %v1093 = vpop.f32.mrf.mxu0
          %v1094 = vadd.f32 0.0, %v1093
          %v1095 = vpop.f32.mrf.mxu0
          %v1096 = vadd.f32 0.0, %v1095
          %1097 = vmatmul.bf16.gmra.mxu0 %v1062
          %v1098 = vpop.f32.mrf.mxu0
          %v1099 = vadd.f32 0.0, %v1098
          %v1100 = vpop.f32.mrf.mxu0
          %v1101 = vadd.f32 0.0, %v1100
          %1102 = vmatmul.bf16.gmra.mxu0 %v1065
          %v1103 = vpop.f32.mrf.mxu0
          %v1104 = vadd.f32 0.0, %v1103
          %v1105 = vpop.f32.mrf.mxu0
          %v1106 = vadd.f32 0.0, %v1105
          %1107 = vmatmul.bf16.gmra.mxu0 %v1068
          %v1108 = vpop.f32.mrf.mxu0
          %v1109 = vadd.f32 0.0, %v1108
          %v1110 = vpop.f32.mrf.mxu0
          %v1111 = vadd.f32 0.0, %v1110
          %1112 = vmatmul.bf16.gmra.mxu0 %v1071
          %v1113 = vpop.f32.mrf.mxu0
          %v1114 = vadd.f32 0.0, %v1113
          %v1115 = vpop.f32.mrf.mxu0
          %v1116 = vadd.f32 0.0, %v1115
          %1117 = vmatmul.bf16.gmra.mxu0 %v1074
          %v1118 = vpop.f32.mrf.mxu0
          %v1119 = vadd.f32 0.0, %v1118
          %v1120 = vpop.f32.mrf.mxu0
          %v1121 = vadd.f32 0.0, %v1120
          %1122 = vmatmul.bf16.gmra.mxu0 %v1077
          %v1123 = vpop.f32.mrf.mxu0
          %v1124 = vadd.f32 0.0, %v1123
          %v1125 = vpop.f32.mrf.mxu0
          %v1126 = vadd.f32 0.0, %v1125
          %1127 = vdwg.mxu0
          %1128 = vset.pattern.permute.xlu0 2
          %1129 = vperm.xlu0 %1128, %v719
          %v1130 = vpop.permute.xlu0 %1129
          %1131 = vset.pattern.permute.xlu0 2
          %1132 = vperm.xlu0 %1131, %v720
          %v1133 = vpop.permute.xlu0 %1132
          %1134 = vset.pattern.permute.xlu0 2
          %1135 = vperm.xlu0 %1134, %v721
          %v1136 = vpop.permute.xlu0 %1135
          %1137 = vset.pattern.permute.xlu0 2
          %1138 = vperm.xlu0 %1137, %v722
          %v1139 = vpop.permute.xlu0 %1138
          %1140 = vset.pattern.permute.xlu0 2
          %1141 = vperm.xlu0 %1140, %v723
          %v1142 = vpop.permute.xlu0 %1141
          %1143 = vset.pattern.permute.xlu0 2
          %1144 = vperm.xlu0 %1143, %v724
          %v1145 = vpop.permute.xlu0 %1144
          %1146 = vset.pattern.permute.xlu0 2
          %1147 = vperm.xlu0 %1146, %v725
          %v1148 = vpop.permute.xlu0 %1147
          %1149 = vset.pattern.permute.xlu0 2
          %1150 = vperm.xlu0 %1149, %v726
          %v1151 = vpop.permute.xlu0 %1150
          %1152 = vset.pattern.permute.xlu0 2
          %1153 = vperm.xlu0 %1152, %v727
          %v1154 = vpop.permute.xlu0 %1153
          %1155 = vset.pattern.permute.xlu0 2
          %1156 = vperm.xlu0 %1155, %v728
          %v1157 = vpop.permute.xlu0 %1156
          %1158 = vset.pattern.permute.xlu0 2
          %1159 = vperm.xlu0 %1158, %v729
          %v1160 = vpop.permute.xlu0 %1159
          %1161 = vset.pattern.permute.xlu0 2
          %1162 = vperm.xlu0 %1161, %v730
          %v1163 = vpop.permute.xlu0 %1162
          %1164 = vset.pattern.permute.xlu0 2
          %1165 = vperm.xlu0 %1164, %v731
          %v1166 = vpop.permute.xlu0 %1165
          %1167 = vset.pattern.permute.xlu0 2
          %1168 = vperm.xlu0 %1167, %v732
          %v1169 = vpop.permute.xlu0 %1168
          %1170 = vset.pattern.permute.xlu0 2
          %1171 = vperm.xlu0 %1170, %v733
          %v1172 = vpop.permute.xlu0 %1171
          %1173 = vset.pattern.permute.xlu0 2
          %1174 = vperm.xlu0 %1173, %v734
          %v1175 = vpop.permute.xlu0 %1174
          %vm1176 = vcmp.eq.s32.totalorder %v1130, 1
          %vm1177 = vcmp.eq.s32.totalorder %v1133, 1
          %vm1178 = vcmp.eq.s32.totalorder %v1136, 1
          %vm1179 = vcmp.eq.s32.totalorder %v1139, 1
          %vm1180 = vcmp.eq.s32.totalorder %v1142, 1
          %vm1181 = vcmp.eq.s32.totalorder %v1145, 1
          %vm1182 = vcmp.eq.s32.totalorder %v1148, 1
          %vm1183 = vcmp.eq.s32.totalorder %v1151, 1
          %vm1184 = vcmp.eq.s32.totalorder %v1154, 1
          %vm1185 = vcmp.eq.s32.totalorder %v1157, 1
          %vm1186 = vcmp.eq.s32.totalorder %v1160, 1
          %vm1187 = vcmp.eq.s32.totalorder %v1163, 1
          %vm1188 = vcmp.eq.s32.totalorder %v1166, 1
          %vm1189 = vcmp.eq.s32.totalorder %v1169, 1
          %vm1190 = vcmp.eq.s32.totalorder %v1172, 1
          %vm1191 = vcmp.eq.s32.totalorder %v1175, 1
          %1208 = vrot.lane.b32.xlu0 %v1089, 96
          %v1209 = vpop.permute.xlu0 %1208
          %1210 = vrot.lane.b32.xlu0 %v1091, 96
          %v1211 = vpop.permute.xlu0 %1210
          %1212 = vrot.lane.b32.xlu0 %v1094, 96
          %v1213 = vpop.permute.xlu0 %1212
          %1214 = vrot.lane.b32.xlu0 %v1096, 96
          %v1215 = vpop.permute.xlu0 %1214
          %1216 = vrot.lane.b32.xlu0 %v1099, 96
          %v1217 = vpop.permute.xlu0 %1216
          %1218 = vrot.lane.b32.xlu0 %v1101, 96
          %v1219 = vpop.permute.xlu0 %1218
          %1220 = vrot.lane.b32.xlu0 %v1104, 96
          %v1221 = vpop.permute.xlu0 %1220
          %1222 = vrot.lane.b32.xlu0 %v1106, 96
          %v1223 = vpop.permute.xlu0 %1222
          %1224 = vrot.lane.b32.xlu0 %v1109, 96
          %v1225 = vpop.permute.xlu0 %1224
          %1226 = vrot.lane.b32.xlu0 %v1111, 96
          %v1227 = vpop.permute.xlu0 %1226
          %1228 = vrot.lane.b32.xlu0 %v1114, 96
          %v1229 = vpop.permute.xlu0 %1228
          %1230 = vrot.lane.b32.xlu0 %v1116, 96
          %v1231 = vpop.permute.xlu0 %1230
          %1232 = vrot.lane.b32.xlu0 %v1119, 96
          %v1233 = vpop.permute.xlu0 %1232
          %1234 = vrot.lane.b32.xlu0 %v1121, 96
          %v1235 = vpop.permute.xlu0 %1234
          %1236 = vrot.lane.b32.xlu0 %v1124, 96
          %v1237 = vpop.permute.xlu0 %1236
          %1238 = vrot.lane.b32.xlu0 %v1126, 96
          %v1239 = vpop.permute.xlu0 %1238
          %v1256 = vsel %vm1176, %v1089, %v1209
          %v1257 = vsel %vm1177, %v1091, %v1211
          %v1258 = vsel %vm1178, %v1094, %v1213
          %v1259 = vsel %vm1179, %v1096, %v1215
          %v1260 = vsel %vm1180, %v1099, %v1217
          %v1261 = vsel %vm1181, %v1101, %v1219
          %v1262 = vsel %vm1182, %v1104, %v1221
          %v1263 = vsel %vm1183, %v1106, %v1223
          %v1264 = vsel %vm1184, %v1109, %v1225
          %v1265 = vsel %vm1185, %v1111, %v1227
          %v1266 = vsel %vm1186, %v1114, %v1229
          %v1267 = vsel %vm1187, %v1116, %v1231
          %v1268 = vsel %vm1188, %v1119, %v1233
          %v1269 = vsel %vm1189, %v1121, %v1235
          %v1270 = vsel %vm1190, %v1124, %v1237
          %v1271 = vsel %vm1191, %v1126, %v1239
          %v1272 = vperm.slane %v464, 4
          %v1273 = vperm.slane %v464, 5
          %v1274 = vsel %vm1176, %v1272, %v1273
          %v1275 = vsel %vm1177, %v1272, %v1273
          %v1276 = vsel %vm1178, %v1272, %v1273
          %v1277 = vsel %vm1179, %v1272, %v1273
          %v1278 = vsel %vm1180, %v1272, %v1273
          %v1279 = vsel %vm1181, %v1272, %v1273
          %v1280 = vsel %vm1182, %v1272, %v1273
          %v1281 = vsel %vm1183, %v1272, %v1273
          %v1282 = vsel %vm1184, %v1272, %v1273
          %v1283 = vsel %vm1185, %v1272, %v1273
          %v1284 = vsel %vm1186, %v1272, %v1273
          %v1285 = vsel %vm1187, %v1272, %v1273
          %v1286 = vsel %vm1188, %v1272, %v1273
          %v1287 = vsel %vm1189, %v1272, %v1273
          %v1288 = vsel %vm1190, %v1272, %v1273
          %v1289 = vsel %vm1191, %v1272, %v1273
          %v1290 = vmul.f32 %v1007, %v1256
          %v1291 = vmul.f32 %v1008, %v1257
          %v1292 = vmul.f32 %v1009, %v1258
          %v1293 = vmul.f32 %v1010, %v1259
          %v1294 = vmul.f32 %v1011, %v1260
          %v1295 = vmul.f32 %v1012, %v1261
          %v1296 = vmul.f32 %v1013, %v1262
          %v1297 = vmul.f32 %v1014, %v1263
          %v1298 = vmul.f32 %v1015, %v1264
          %v1299 = vmul.f32 %v1016, %v1265
          %v1300 = vmul.f32 %v1017, %v1266
          %v1301 = vmul.f32 %v1018, %v1267
          %v1302 = vmul.f32 %v1019, %v1268
          %v1303 = vmul.f32 %v1020, %v1269
          %v1304 = vmul.f32 %v1021, %v1270
          %v1305 = vmul.f32 %v1022, %v1271
          %v1306 = vpack.c.bf16 %v1291, %v1290
          %v1307 = vpack.c.bf16 %v1293, %v1292
          %v1308 = vpack.c.bf16 %v1295, %v1294
          %v1309 = vpack.c.bf16 %v1297, %v1296
          %v1310 = vpack.c.bf16 %v1299, %v1298
          %v1311 = vpack.c.bf16 %v1301, %v1300
          %v1312 = vpack.c.bf16 %v1303, %v1302
          %v1313 = vpack.c.bf16 %v1305, %v1304
          %v1314 = vunpack.c.h.b16 %v449
          %v1315 = vunpack.c.h.b16 %v451
          %v1316 = vunpack.c.h.b16 %v453
          %v1317 = vunpack.c.h.b16 %v455
          %v1318 = vpack.c.b16 %v1315, %v1314
          %v1319 = vpack.c.b16 %v1317, %v1316
          %vm1322 = vcmask 261120
          %v1324 = vsel %vm1322, %v1306, 0
          %v1327 = vsel %vm1322, %v1307, 0
          %v1330 = vsel %vm1322, %v1308, 0
          %v1333 = vsel %vm1322, %v1309, 0
          %v1336 = vsel %vm1322, %v1310, 0
          %v1339 = vsel %vm1322, %v1311, 0
          %v1342 = vsel %vm1322, %v1312, 0
          %v1345 = vsel %vm1322, %v1313, 0
          %1347 = vmatpush.bf16.msra.mxu0 0
          %1348 = vmatpush.bf16.msra.mxu0 0
          %1349 = vmatpush.bf16.msra.mxu0 0
          %1350 = vmatpush.bf16.msra.mxu0 0
          %1351 = vmatpush.bf16.msra.mxu0 0
          %1352 = vmatpush.bf16.msra.mxu0 0
          %1353 = vmatpush.bf16.msra.mxu0 %v1319
          %1354 = vmatpush.bf16.msra.mxu0 %v1318
          %1355 = vmatmul.bf16.gmra.mxu0 %v1324
          %v1356 = vpop.f32.mrf.mxu0
          %v1357 = vadd.f32 0.0, %v1356
          %v1358 = vpop.f32.mrf.mxu0
          %v1359 = vadd.f32 0.0, %v1358
          %1360 = vmatmul.bf16.gmra.mxu0 %v1327
          %v1361 = vpop.f32.mrf.mxu0
          %v1362 = vadd.f32 0.0, %v1361
          %v1363 = vpop.f32.mrf.mxu0
          %v1364 = vadd.f32 0.0, %v1363
          %1365 = vmatmul.bf16.gmra.mxu0 %v1330
          %v1366 = vpop.f32.mrf.mxu0
          %v1367 = vadd.f32 0.0, %v1366
          %v1368 = vpop.f32.mrf.mxu0
          %v1369 = vadd.f32 0.0, %v1368
          %1370 = vmatmul.bf16.gmra.mxu0 %v1333
          %v1371 = vpop.f32.mrf.mxu0
          %v1372 = vadd.f32 0.0, %v1371
          %v1373 = vpop.f32.mrf.mxu0
          %v1374 = vadd.f32 0.0, %v1373
          %1375 = vmatmul.bf16.gmra.mxu0 %v1336
          %v1376 = vpop.f32.mrf.mxu0
          %v1377 = vadd.f32 0.0, %v1376
          %v1378 = vpop.f32.mrf.mxu0
          %v1379 = vadd.f32 0.0, %v1378
          %1380 = vmatmul.bf16.gmra.mxu0 %v1339
          %v1381 = vpop.f32.mrf.mxu0
          %v1382 = vadd.f32 0.0, %v1381
          %v1383 = vpop.f32.mrf.mxu0
          %v1384 = vadd.f32 0.0, %v1383
          %1385 = vmatmul.bf16.gmra.mxu0 %v1342
          %v1386 = vpop.f32.mrf.mxu0
          %v1387 = vadd.f32 0.0, %v1386
          %v1388 = vpop.f32.mrf.mxu0
          %v1389 = vadd.f32 0.0, %v1388
          %1390 = vmatmul.bf16.gmra.mxu0 %v1345
          %v1391 = vpop.f32.mrf.mxu0
          %v1392 = vadd.f32 0.0, %v1391
          %v1393 = vpop.f32.mrf.mxu0
          %v1394 = vadd.f32 0.0, %v1393
          %1395 = vdwg.mxu0
          %v1396 = vmul.f32 %v1357, %v1274
          %v1397 = vmul.f32 %v1359, %v1275
          %v1398 = vmul.f32 %v1362, %v1276
          %v1399 = vmul.f32 %v1364, %v1277
          %v1400 = vmul.f32 %v1367, %v1278
          %v1401 = vmul.f32 %v1369, %v1279
          %v1402 = vmul.f32 %v1372, %v1280
          %v1403 = vmul.f32 %v1374, %v1281
          %v1404 = vmul.f32 %v1377, %v1282
          %v1405 = vmul.f32 %v1379, %v1283
          %v1406 = vmul.f32 %v1382, %v1284
          %v1407 = vmul.f32 %v1384, %v1285
          %v1408 = vmul.f32 %v1387, %v1286
          %v1409 = vmul.f32 %v1389, %v1287
          %v1410 = vmul.f32 %v1392, %v1288
          %v1411 = vmul.f32 %v1394, %v1289
          %s1412 = smul.u32 %s432, 16
          %v1413 = vstv %s1412
          %vm1414 = vcmp.ge.s32.totalorder %v466, %v1413
          %vm1415 = vcmp.ge.s32.totalorder %v467, %v1413
          %vm1416 = vcmp.ge.s32.totalorder %v468, %v1413
          %vm1417 = vcmp.ge.s32.totalorder %v469, %v1413
          %vm1418 = vcmp.ge.s32.totalorder %v470, %v1413
          %vm1419 = vcmp.ge.s32.totalorder %v471, %v1413
          %vm1420 = vcmp.ge.s32.totalorder %v472, %v1413
          %vm1421 = vcmp.ge.s32.totalorder %v473, %v1413
          %vm1422 = vcmp.ge.s32.totalorder %v474, %v1413
          %vm1423 = vcmp.ge.s32.totalorder %v475, %v1413
          %vm1424 = vcmp.ge.s32.totalorder %v476, %v1413
          %vm1425 = vcmp.ge.s32.totalorder %v477, %v1413
          %vm1426 = vcmp.ge.s32.totalorder %v478, %v1413
          %vm1427 = vcmp.ge.s32.totalorder %v479, %v1413
          %vm1428 = vcmp.ge.s32.totalorder %v480, %v1413
          %vm1429 = vcmp.ge.s32.totalorder %v481, %v1413
          %s1430 = sadd.s32 %s432, 1
          %s1431 = smul.u32 %s1430, 16
          %v1432 = vstv %s1431
          %vm1433 = vcmp.lt.s32.totalorder %v466, %v1432
          %vm1434 = vcmp.lt.s32.totalorder %v467, %v1432
          %vm1435 = vcmp.lt.s32.totalorder %v468, %v1432
          %vm1436 = vcmp.lt.s32.totalorder %v469, %v1432
          %vm1437 = vcmp.lt.s32.totalorder %v470, %v1432
          %vm1438 = vcmp.lt.s32.totalorder %v471, %v1432
          %vm1439 = vcmp.lt.s32.totalorder %v472, %v1432
          %vm1440 = vcmp.lt.s32.totalorder %v473, %v1432
          %vm1441 = vcmp.lt.s32.totalorder %v474, %v1432
          %vm1442 = vcmp.lt.s32.totalorder %v475, %v1432
          %vm1443 = vcmp.lt.s32.totalorder %v476, %v1432
          %vm1444 = vcmp.lt.s32.totalorder %v477, %v1432
          %vm1445 = vcmp.lt.s32.totalorder %v478, %v1432
          %vm1446 = vcmp.lt.s32.totalorder %v479, %v1432
          %vm1447 = vcmp.lt.s32.totalorder %v480, %v1432
          %vm1448 = vcmp.lt.s32.totalorder %v481, %v1432
          %vm1449 = vmand %vm1414, %vm1433
          %vm1450 = vmand %vm1415, %vm1434
          %vm1451 = vmand %vm1416, %vm1435
          %vm1452 = vmand %vm1417, %vm1436
          %vm1453 = vmand %vm1418, %vm1437
          %vm1454 = vmand %vm1419, %vm1438
          %vm1455 = vmand %vm1420, %vm1439
          %vm1456 = vmand %vm1421, %vm1440
          %vm1457 = vmand %vm1422, %vm1441
          %vm1458 = vmand %vm1423, %vm1442
          %vm1459 = vmand %vm1424, %vm1443
          %vm1460 = vmand %vm1425, %vm1444
          %vm1461 = vmand %vm1426, %vm1445
          %vm1462 = vmand %vm1427, %vm1446
          %vm1463 = vmand %vm1428, %vm1447
          %vm1464 = vmand %vm1429, %vm1448
          %v1465 = vsel %vm1449, 1, 0
          %v1466 = vsel %vm1450, 1, 0
          %v1467 = vsel %vm1451, 1, 0
          %v1468 = vsel %vm1452, 1, 0
          %v1469 = vsel %vm1453, 1, 0
          %v1470 = vsel %vm1454, 1, 0
          %v1471 = vsel %vm1455, 1, 0
          %v1472 = vsel %vm1456, 1, 0
          %v1473 = vsel %vm1457, 1, 0
          %v1474 = vsel %vm1458, 1, 0
          %v1475 = vsel %vm1459, 1, 0
          %v1476 = vsel %vm1460, 1, 0
          %v1477 = vsel %vm1461, 1, 0
          %v1478 = vsel %vm1462, 1, 0
          %v1479 = vsel %vm1463, 1, 0
          %v1480 = vsel %vm1464, 1, 0
          %1481 = vset.pattern.permute.xlu0 3
          %1482 = vperm.xlu0 %1481, %v1465
          %v1483 = vpop.permute.xlu0 %1482
          %1484 = vset.pattern.permute.xlu0 3
          %1485 = vperm.xlu0 %1484, %v1466
          %v1486 = vpop.permute.xlu0 %1485
          %1487 = vset.pattern.permute.xlu0 3
          %1488 = vperm.xlu0 %1487, %v1467
          %v1489 = vpop.permute.xlu0 %1488
          %1490 = vset.pattern.permute.xlu0 3
          %1491 = vperm.xlu0 %1490, %v1468
          %v1492 = vpop.permute.xlu0 %1491
          %1493 = vset.pattern.permute.xlu0 3
          %1494 = vperm.xlu0 %1493, %v1469
          %v1495 = vpop.permute.xlu0 %1494
          %1496 = vset.pattern.permute.xlu0 3
          %1497 = vperm.xlu0 %1496, %v1470
          %v1498 = vpop.permute.xlu0 %1497
          %1499 = vset.pattern.permute.xlu0 3
          %1500 = vperm.xlu0 %1499, %v1471
          %v1501 = vpop.permute.xlu0 %1500
          %1502 = vset.pattern.permute.xlu0 3
          %1503 = vperm.xlu0 %1502, %v1472
          %v1504 = vpop.permute.xlu0 %1503
          %1505 = vset.pattern.permute.xlu0 3
          %1506 = vperm.xlu0 %1505, %v1473
          %v1507 = vpop.permute.xlu0 %1506
          %1508 = vset.pattern.permute.xlu0 3
          %1509 = vperm.xlu0 %1508, %v1474
          %v1510 = vpop.permute.xlu0 %1509
          %1511 = vset.pattern.permute.xlu0 3
          %1512 = vperm.xlu0 %1511, %v1475
          %v1513 = vpop.permute.xlu0 %1512
          %1514 = vset.pattern.permute.xlu0 3
          %1515 = vperm.xlu0 %1514, %v1476
          %v1516 = vpop.permute.xlu0 %1515
          %1517 = vset.pattern.permute.xlu0 3
          %1518 = vperm.xlu0 %1517, %v1477
          %v1519 = vpop.permute.xlu0 %1518
          %1520 = vset.pattern.permute.xlu0 3
          %1521 = vperm.xlu0 %1520, %v1478
          %v1522 = vpop.permute.xlu0 %1521
          %1523 = vset.pattern.permute.xlu0 3
          %1524 = vperm.xlu0 %1523, %v1479
          %v1525 = vpop.permute.xlu0 %1524
          %1526 = vset.pattern.permute.xlu0 3
          %1527 = vperm.xlu0 %1526, %v1480
          %v1528 = vpop.permute.xlu0 %1527
          %vm1529 = vcmp.eq.s32.totalorder %v1483, 1
          %vm1530 = vcmp.eq.s32.totalorder %v1486, 1
          %vm1531 = vcmp.eq.s32.totalorder %v1489, 1
          %vm1532 = vcmp.eq.s32.totalorder %v1492, 1
          %vm1533 = vcmp.eq.s32.totalorder %v1495, 1
          %vm1534 = vcmp.eq.s32.totalorder %v1498, 1
          %vm1535 = vcmp.eq.s32.totalorder %v1501, 1
          %vm1536 = vcmp.eq.s32.totalorder %v1504, 1
          %vm1537 = vcmp.eq.s32.totalorder %v1507, 1
          %vm1538 = vcmp.eq.s32.totalorder %v1510, 1
          %vm1539 = vcmp.eq.s32.totalorder %v1513, 1
          %vm1540 = vcmp.eq.s32.totalorder %v1516, 1
          %vm1541 = vcmp.eq.s32.totalorder %v1519, 1
          %vm1542 = vcmp.eq.s32.totalorder %v1522, 1
          %vm1543 = vcmp.eq.s32.totalorder %v1525, 1
          %vm1544 = vcmp.eq.s32.totalorder %v1528, 1
          %v1545 = vsel %vm1529, %v1396, -1e+30
          %v1546 = vsel %vm1530, %v1397, -1e+30
          %v1547 = vsel %vm1531, %v1398, -1e+30
          %v1548 = vsel %vm1532, %v1399, -1e+30
          %v1549 = vsel %vm1533, %v1400, -1e+30
          %v1550 = vsel %vm1534, %v1401, -1e+30
          %v1551 = vsel %vm1535, %v1402, -1e+30
          %v1552 = vsel %vm1536, %v1403, -1e+30
          %v1553 = vsel %vm1537, %v1404, -1e+30
          %v1554 = vsel %vm1538, %v1405, -1e+30
          %v1555 = vsel %vm1539, %v1406, -1e+30
          %v1556 = vsel %vm1540, %v1407, -1e+30
          %v1557 = vsel %vm1541, %v1408, -1e+30
          %v1558 = vsel %vm1542, %v1409, -1e+30
          %v1559 = vsel %vm1543, %v1410, -1e+30
          %v1560 = vsel %vm1544, %v1411, -1e+30
          %v1561 = vsel %vm1322, %v1545, -inf
          %v1562 = vsel %vm1322, %v1546, -inf
          %v1563 = vsel %vm1322, %v1547, -inf
          %v1564 = vsel %vm1322, %v1548, -inf
          %v1565 = vsel %vm1322, %v1549, -inf
          %v1566 = vmax.f32 %v1561, %v1565
          %v1567 = vsel %vm1322, %v1550, -inf
          %v1568 = vmax.f32 %v1562, %v1567
          %v1569 = vsel %vm1322, %v1551, -inf
          %v1570 = vmax.f32 %v1563, %v1569
          %v1571 = vsel %vm1322, %v1552, -inf
          %v1572 = vmax.f32 %v1564, %v1571
          %v1573 = vsel %vm1322, %v1553, -inf
          %v1574 = vmax.f32 %v1566, %v1573
          %v1575 = vsel %vm1322, %v1554, -inf
          %v1576 = vmax.f32 %v1568, %v1575
          %v1577 = vsel %vm1322, %v1555, -inf
          %v1578 = vmax.f32 %v1570, %v1577
          %v1579 = vsel %vm1322, %v1556, -inf
          %v1580 = vmax.f32 %v1572, %v1579
          %v1581 = vsel %vm1322, %v1557, -inf
          %v1582 = vmax.f32 %v1574, %v1581
          %v1583 = vsel %vm1322, %v1558, -inf
          %v1584 = vmax.f32 %v1576, %v1583
          %v1585 = vsel %vm1322, %v1559, -inf
          %v1586 = vmax.f32 %v1578, %v1585
          %v1587 = vsel %vm1322, %v1560, -inf
          %v1588 = vmax.f32 %v1580, %v1587
          %v1589 = vmax.f32 %v1582, %v1584
          %v1590 = vmax.f32 %v1586, %v1588
          %v1591 = vmax.f32 %v1589, %v1590
          %v1592 = vrot.slane %v1591, 4
          %v1593 = vmax.f32 %v1591, %v1592
          %v1594 = vrot.slane %v1593, 2
          %v1595 = vmax.f32 %v1593, %v1594
          %v1596 = vrot.slane %v1595, 1
          %v1597 = vmax.f32 %v1595, %v1596
          %v1598 = vld [vmem:[#allocation2] sm:$0x1]
          %v1599 = vmax.f32 %v1598, %v1597
          %v1600 = vsub.f32 %v1598, %v1599
          %v1601 = vmul.f32 %v1600, 1.442695
          %v1602 = vpow.pop %v1601
          %v1604 = vperm.slane %v1599, 0
          %v1606 = vsub.f32 %v1396, %v1604
          %v1607 = vsub.f32 %v1397, %v1604
          %v1608 = vsub.f32 %v1398, %v1604
          %v1609 = vsub.f32 %v1399, %v1604
          %v1610 = vsub.f32 %v1400, %v1604
          %v1611 = vsub.f32 %v1401, %v1604
          %v1612 = vsub.f32 %v1402, %v1604
          %v1613 = vsub.f32 %v1403, %v1604
          %v1614 = vsub.f32 %v1404, %v1604
          %v1615 = vsub.f32 %v1405, %v1604
          %v1616 = vsub.f32 %v1406, %v1604
          %v1617 = vsub.f32 %v1407, %v1604
          %v1618 = vsub.f32 %v1408, %v1604
          %v1619 = vsub.f32 %v1409, %v1604
          %v1620 = vsub.f32 %v1410, %v1604
          %v1621 = vsub.f32 %v1411, %v1604
          %v1622 = vmin.f32 %v1606, 0.0
          %v1623 = vmin.f32 %v1607, 0.0
          %v1624 = vmin.f32 %v1608, 0.0
          %v1625 = vmin.f32 %v1609, 0.0
          %v1626 = vmin.f32 %v1610, 0.0
          %v1627 = vmin.f32 %v1611, 0.0
          %v1628 = vmin.f32 %v1612, 0.0
          %v1629 = vmin.f32 %v1613, 0.0
          %v1630 = vmin.f32 %v1614, 0.0
          %v1631 = vmin.f32 %v1615, 0.0
          %v1632 = vmin.f32 %v1616, 0.0
          %v1633 = vmin.f32 %v1617, 0.0
          %v1634 = vmin.f32 %v1618, 0.0
          %v1635 = vmin.f32 %v1619, 0.0
          %v1636 = vmin.f32 %v1620, 0.0
          %v1637 = vmin.f32 %v1621, 0.0
          %v1638 = vmul.f32 %v1622, 1.442695
          %v1639 = vpow.pop %v1638
          %v1640 = vmul.f32 %v1623, 1.442695
          %v1641 = vpow.pop %v1640
          %v1642 = vmul.f32 %v1624, 1.442695
          %v1643 = vpow.pop %v1642
          %v1644 = vmul.f32 %v1625, 1.442695
          %v1645 = vpow.pop %v1644
          %v1646 = vmul.f32 %v1626, 1.442695
          %v1647 = vpow.pop %v1646
          %v1648 = vmul.f32 %v1627, 1.442695
          %v1649 = vpow.pop %v1648
          %v1650 = vmul.f32 %v1628, 1.442695
          %v1651 = vpow.pop %v1650
          %v1652 = vmul.f32 %v1629, 1.442695
          %v1653 = vpow.pop %v1652
          %v1654 = vmul.f32 %v1630, 1.442695
          %v1655 = vpow.pop %v1654
          %v1656 = vmul.f32 %v1631, 1.442695
          %v1657 = vpow.pop %v1656
          %v1658 = vmul.f32 %v1632, 1.442695
          %v1659 = vpow.pop %v1658
          %v1660 = vmul.f32 %v1633, 1.442695
          %v1661 = vpow.pop %v1660
          %v1662 = vmul.f32 %v1634, 1.442695
          %v1663 = vpow.pop %v1662
          %v1664 = vmul.f32 %v1635, 1.442695
          %v1665 = vpow.pop %v1664
          %v1666 = vmul.f32 %v1636, 1.442695
          %v1667 = vpow.pop %v1666
          %v1668 = vmul.f32 %v1637, 1.442695
          %v1669 = vpow.pop %v1668
          %v1670 = vlaneseq
          %v1671 = vshrl.u32 %v1670, 7
          %v1672 = vadd.s32 %v1671, 8
          %v1673 = vadd.s32 %v1413, %v1671
          %v1674 = vadd.s32 %v1413, %v1672
          %v1675 = vld [vmem:[%s403] sm:$0x1]
          %v1676 = vperm.slane %v1675, 0
          %vm1677 = vcmp.eq.s32.totalorder %v1676, %v1673
          %vm1678 = vcmp.eq.s32.totalorder %v1676, %v1674
          %v1679 = vsel %vm1677, 1, 0
          %v1680 = vsel %vm1678, 1, 0
          %v1681 = vcvt.s32.f32 %v1679
          %v1682 = vcvt.s32.f32 %v1680
          %v1683 = vpack.c.bf16 %v1682, %v1681
          %1700 = vrot.lane.b32.xlu0 %v1256, 64
          %v1701 = vpop.permute.xlu0 %1700
          %1702 = vrot.lane.b32.xlu0 %v1257, 64
          %v1703 = vpop.permute.xlu0 %1702
          %1704 = vrot.lane.b32.xlu0 %v1258, 64
          %v1705 = vpop.permute.xlu0 %1704
          %1706 = vrot.lane.b32.xlu0 %v1259, 64
          %v1707 = vpop.permute.xlu0 %1706
          %1708 = vrot.lane.b32.xlu0 %v1260, 64
          %v1709 = vpop.permute.xlu0 %1708
          %1710 = vrot.lane.b32.xlu0 %v1261, 64
          %v1711 = vpop.permute.xlu0 %1710
          %1712 = vrot.lane.b32.xlu0 %v1262, 64
          %v1713 = vpop.permute.xlu0 %1712
          %1714 = vrot.lane.b32.xlu0 %v1263, 64
          %v1715 = vpop.permute.xlu0 %1714
          %1716 = vrot.lane.b32.xlu0 %v1264, 64
          %v1717 = vpop.permute.xlu0 %1716
          %1718 = vrot.lane.b32.xlu0 %v1265, 64
          %v1719 = vpop.permute.xlu0 %1718
          %1720 = vrot.lane.b32.xlu0 %v1266, 64
          %v1721 = vpop.permute.xlu0 %1720
          %1722 = vrot.lane.b32.xlu0 %v1267, 64
          %v1723 = vpop.permute.xlu0 %1722
          %1724 = vrot.lane.b32.xlu0 %v1268, 64
          %v1725 = vpop.permute.xlu0 %1724
          %1726 = vrot.lane.b32.xlu0 %v1269, 64
          %v1727 = vpop.permute.xlu0 %1726
          %1728 = vrot.lane.b32.xlu0 %v1270, 64
          %v1729 = vpop.permute.xlu0 %1728
          %1730 = vrot.lane.b32.xlu0 %v1271, 64
          %v1731 = vpop.permute.xlu0 %1730
          %v1748 = vmul.f32 %v1639, %v1701
          %v1749 = vmul.f32 %v1641, %v1703
          %v1750 = vmul.f32 %v1643, %v1705
          %v1751 = vmul.f32 %v1645, %v1707
          %v1752 = vmul.f32 %v1647, %v1709
          %v1753 = vmul.f32 %v1649, %v1711
          %v1754 = vmul.f32 %v1651, %v1713
          %v1755 = vmul.f32 %v1653, %v1715
          %v1756 = vmul.f32 %v1655, %v1717
          %v1757 = vmul.f32 %v1657, %v1719
          %v1758 = vmul.f32 %v1659, %v1721
          %v1759 = vmul.f32 %v1661, %v1723
          %v1760 = vmul.f32 %v1663, %v1725
          %v1761 = vmul.f32 %v1665, %v1727
          %v1762 = vmul.f32 %v1667, %v1729
          %v1763 = vmul.f32 %v1669, %v1731
          %1780 = vrot.lane.b32.xlu0 %v1748, 32
          %v1781 = vpop.permute.xlu0 %1780
          %1782 = vrot.lane.b32.xlu0 %v1749, 32
          %v1783 = vpop.permute.xlu0 %1782
          %1784 = vrot.lane.b32.xlu0 %v1750, 32
          %v1785 = vpop.permute.xlu0 %1784
          %1786 = vrot.lane.b32.xlu0 %v1751, 32
          %v1787 = vpop.permute.xlu0 %1786
          %1788 = vrot.lane.b32.xlu0 %v1752, 32
          %v1789 = vpop.permute.xlu0 %1788
          %1790 = vrot.lane.b32.xlu0 %v1753, 32
          %v1791 = vpop.permute.xlu0 %1790
          %1792 = vrot.lane.b32.xlu0 %v1754, 32
          %v1793 = vpop.permute.xlu0 %1792
          %1794 = vrot.lane.b32.xlu0 %v1755, 32
          %v1795 = vpop.permute.xlu0 %1794
          %1796 = vrot.lane.b32.xlu0 %v1756, 32
          %v1797 = vpop.permute.xlu0 %1796
          %1798 = vrot.lane.b32.xlu0 %v1757, 32
          %v1799 = vpop.permute.xlu0 %1798
          %1800 = vrot.lane.b32.xlu0 %v1758, 32
          %v1801 = vpop.permute.xlu0 %1800
          %1802 = vrot.lane.b32.xlu0 %v1759, 32
          %v1803 = vpop.permute.xlu0 %1802
          %1804 = vrot.lane.b32.xlu0 %v1760, 32
          %v1805 = vpop.permute.xlu0 %1804
          %1806 = vrot.lane.b32.xlu0 %v1761, 32
          %v1807 = vpop.permute.xlu0 %1806
          %1808 = vrot.lane.b32.xlu0 %v1762, 32
          %v1809 = vpop.permute.xlu0 %1808
          %1810 = vrot.lane.b32.xlu0 %v1763, 32
          %v1811 = vpop.permute.xlu0 %1810
          %v1828 = vsel %vm1322, %v1639, %v1781
          %v1829 = vsel %vm1322, %v1641, %v1783
          %v1830 = vsel %vm1322, %v1643, %v1785
          %v1831 = vsel %vm1322, %v1645, %v1787
          %v1832 = vsel %vm1322, %v1647, %v1789
          %v1833 = vsel %vm1322, %v1649, %v1791
          %v1834 = vsel %vm1322, %v1651, %v1793
          %v1835 = vsel %vm1322, %v1653, %v1795
          %v1836 = vsel %vm1322, %v1655, %v1797
          %v1837 = vsel %vm1322, %v1657, %v1799
          %v1838 = vsel %vm1322, %v1659, %v1801
          %v1839 = vsel %vm1322, %v1661, %v1803
          %v1840 = vsel %vm1322, %v1663, %v1805
          %v1841 = vsel %vm1322, %v1665, %v1807
          %v1842 = vsel %vm1322, %v1667, %v1809
          %v1843 = vsel %vm1322, %v1669, %v1811
          %v1844 = vpack.c.bf16 %v1829, %v1828
          %v1845 = vpack.c.bf16 %v1831, %v1830
          %v1846 = vpack.c.bf16 %v1833, %v1832
          %v1847 = vpack.c.bf16 %v1835, %v1834
          %v1848 = vpack.c.bf16 %v1837, %v1836
          %v1849 = vpack.c.bf16 %v1839, %v1838
          %v1850 = vpack.c.bf16 %v1841, %v1840
          %v1851 = vpack.c.bf16 %v1843, %v1842
          %1852 = vmatpush.bf16.msra.mxu0 %v1851
          %1853 = vmatpush.bf16.msra.mxu0 %v1850
          %1854 = vmatpush.bf16.msra.mxu0 %v1849
          %1855 = vmatpush.bf16.msra.mxu0 %v1848
          %1856 = vmatpush.bf16.msra.mxu0 %v1847
          %1857 = vmatpush.bf16.msra.mxu0 %v1846
          %1858 = vmatpush.bf16.msra.mxu0 %v1845
          %1859 = vmatpush.bf16.msra.mxu0 %v1844
          %1860 = vmatmul.bf16.gmra.mxu0 %v1683
          %v1861 = vpop.f32.mrf.mxu0
          %v1862 = vadd.f32 0.0, %v1861
          %v1863 = vpop.f32.mrf.mxu0
          %v1864 = vadd.f32 0.0, %v1863
          %1865 = vdwg.mxu0
          %v1866 = vld [vmem:[#allocation3] sm:$0xff]
          %v1867 = vld [vmem:[#allocation3 + $0x8] sm:$0xff]
          %v1869 = vperm.slane %v1602, 0
          %1870 = vrot.lane.b32.xlu0 %v1869, 32
          %v1871 = vpop.permute.xlu0 %1870
          %v1873 = vsel %vm1322, %v1602, %v1871
          %v1874 = vperm.slane %v1873, 0
          %v1875 = vmul.f32 %v1866, %v1874
          %v1876 = vmul.f32 %v1867, %v1874
          %v1877 = vadd.f32 %v1875, %v1862
          %v1878 = vadd.f32 %v1876, %v1864
          %1879 = vst.msk [vmem:[#allocation3] sm:$0xff] %vm580, %v1877
          %1880 = vst.msk [vmem:[#allocation3 + $0x8] sm:$0xff] %vm580, %v1878
          %vm1881 = vcmask 253952
          %1882 = vst.msk [vmem:[#allocation2] sm:$0x1] %vm1881, %v1599
        $region56: #{general_conv_forward.1} parent=47 // pred_fallthru
          _
        %s1883 = sld [smem:[#allocation8 + %s54]]
        %p1884 = scmp.eq.s32.totalorder %s1883, 1
        // Predicated region
        $region57: #{general_conv_forward.1} parent=47 // pred_check
          %p1885 = pneg %p1884
        $region58: #{general_conv_forward.1} parent=47 // pred_check_branch
          %1887 = sbr.rel (%p1885) target = $region60
        $region59: #{general_conv_forward.1} parent=47 // pred_region
          %v1888 = vld [vmem:[%s10 + $0x8] sm:$0xff]
          %v1889 = vld [vmem:[%s10 + $0x18] sm:$0xff]
          %v1890 = vld [vmem:[%s10 + $0x28] sm:$0xff]
          %v1891 = vld [vmem:[%s10 + $0x38] sm:$0xff]
          %v1892 = vld [vmem:[%s11] sm:$0xff]
          %v1893 = vld [vmem:[#allocation3] sm:$0xff]
          %v1894 = vld [vmem:[#allocation3 + $0x8] sm:$0xff]
          %vm1895 = vcmp.gt.f32.partialorder %v1893, 0.0
          %vm1896 = vcmp.gt.f32.partialorder %v1894, 0.0
          %v1897 = vsel %vm1895, %v1893, 1.0
          %v1898 = vsel %vm1896, %v1894, 1.0
          %1901 = vrot.lane.b32.xlu0 %v1897, 32
          %v1902 = vpop.permute.xlu0 %1901
          %1903 = vrot.lane.b32.xlu0 %v1898, 32
          %v1904 = vpop.permute.xlu0 %1903
          %v1907 = vrcp.pop %v1902
          %v1908 = vmul.f32 %v1902, %v1907
          %v1909 = vsub.f32 1.0, %v1908
          %v1910 = vmul.f32 %v1907, %v1909
          %v1911 = vadd.f32 %v1907, %v1910
          %vm1912 = vweird.f32 %v1902
          %vm1913 = vweird.f32 %v1907
          %vm1914 = vmor %vm1912, %vm1913
          %v1915 = vsel %vm1914, %v1907, %v1911
          %v1916 = vand.u32 2147483647, %v1902
          %vm1917 = vcmp.eq.f32.partialorder %v1916, 8.507059e+37
          %v1918 = vand.u32 %v1902, 2147483648
          %v1919 = vor.u32 1.1754944e-38, %v1918
          %v1920 = vsel %vm1917, %v1919, %v1915
          %v1921 = vmul.f32 %v1893, %v1920
          %v1922 = vrcp.pop %v1904
          %v1923 = vmul.f32 %v1904, %v1922
          %v1924 = vsub.f32 1.0, %v1923
          %v1925 = vmul.f32 %v1922, %v1924
          %v1926 = vadd.f32 %v1922, %v1925
          %vm1927 = vweird.f32 %v1904
          %vm1928 = vweird.f32 %v1922
          %vm1929 = vmor %vm1927, %vm1928
          %v1930 = vsel %vm1929, %v1922, %v1926
          %v1931 = vand.u32 2147483647, %v1904
          %vm1932 = vcmp.eq.f32.partialorder %v1931, 8.507059e+37
          %v1933 = vand.u32 %v1904, 2147483648
          %v1934 = vor.u32 1.1754944e-38, %v1933
          %v1935 = vsel %vm1932, %v1934, %v1930
          %v1936 = vmul.f32 %v1894, %v1935
          %v1937 = vmul.f32 %v1921, 0.5
          %v1938 = vmul.f32 %v1936, 0.5
          %v1939 = vmul.f32 %v1921, 0.044715
          %v1940 = vmul.f32 %v1936, 0.044715
          %v1941 = vmul.f32 %v1939, %v1921
          %v1942 = vmul.f32 %v1940, %v1936
          %v1943 = vmul.f32 %v1941, %v1921
          %v1944 = vmul.f32 %v1942, %v1936
          %v1945 = vadd.f32 %v1921, %v1943
          %v1946 = vadd.f32 %v1936, %v1944
          %v1947 = vmul.f32 %v1945, 0.7978846
          %v1948 = vmul.f32 %v1946, 0.7978846
          %v1949 = vtanh.pop %v1947
          %v1950 = vtanh.pop %v1948
          %v1951 = vadd.f32 %v1949, 1.0
          %v1952 = vadd.f32 %v1950, 1.0
          %v1953 = vmul.f32 %v1937, %v1951
          %v1954 = vmul.f32 %v1938, %v1952
          %v1955 = vpack.c.bf16 %v1954, %v1953
          %v1956 = vperm.slane %v1892, 1
          %1958 = vrot.lane.b32.xlu0 %v1955, 96
          %v1959 = vpop.permute.xlu0 %1958
          %v1964 = vunpack.c.h.b16 %v1888
          %v1965 = vunpack.c.h.b16 %v1889
          %v1966 = vunpack.c.h.b16 %v1890
          %v1967 = vunpack.c.h.b16 %v1891
          %v1968 = vpack.c.b16 %v1965, %v1964
          %v1969 = vpack.c.b16 %v1967, %v1966
          %1970 = vrot.lane.b32.xlu0 %v1968, 64
          %v1971 = vpop.permute.xlu0 %1970
          %1972 = vrot.lane.b32.xlu0 %v1969, 64
          %v1973 = vpop.permute.xlu0 %1972
          %vm1976 = vcmask 261120
          %v1978 = vsel %vm1976, %v1959, 0
          %1980 = vmatpush.bf16.msra.mxu0 0
          %1981 = vmatpush.bf16.msra.mxu0 0
          %1982 = vmatpush.bf16.msra.mxu0 0
          %1983 = vmatpush.bf16.msra.mxu0 0
          %1984 = vmatpush.bf16.msra.mxu0 0
          %1985 = vmatpush.bf16.msra.mxu0 0
          %1986 = vmatpush.bf16.msra.mxu0 %v1973
          %1987 = vmatpush.bf16.msra.mxu0 %v1971
          %1988 = vmatmul.bf16.gmra.mxu0 %v1978
          %v1989 = vpop.f32.mrf.mxu0
          %v1990 = vadd.f32 %v1956, %v1989
          %v1991 = vpop.f32.mrf.mxu0
          %v1992 = vadd.f32 %v1956, %v1991
          %1993 = vdwg.mxu0
          %v1994 = vld [vmem:[%s418] sm:$0xff]
          %v1995 = vld [vmem:[%s418 + $0x8] sm:$0xff]
          %v1996 = vld [vmem:[%s426] sm:$0xff]
          %v1997 = vld [vmem:[%s426 + $0x8] sm:$0xff]
          %vm1998 = vcmp.eq.s32.totalorder %v1996, 0
          %vm1999 = vcmp.eq.s32.totalorder %v1997, 0
          %v2000 = vsel %vm1998, 1, 0
          %v2001 = vsel %vm1999, 1, 0
          %2002 = vset.pattern.permute.xlu0 0
          %2003 = vperm.xlu0 %2002, %v2000
          %v2004 = vpop.permute.xlu0 %2003
          %2005 = vset.pattern.permute.xlu0 0
          %2006 = vperm.xlu0 %2005, %v2001
          %v2007 = vpop.permute.xlu0 %2006
          %vm2008 = vcmp.eq.s32.totalorder %v2004, 1
          %vm2009 = vcmp.eq.s32.totalorder %v2007, 1
          %2012 = vrot.lane.b32.xlu0 %v1990, 96
          %v2013 = vpop.permute.xlu0 %2012
          %2014 = vrot.lane.b32.xlu0 %v1992, 96
          %v2015 = vpop.permute.xlu0 %2014
          %v2018 = vsel %vm2008, %v1990, %v2013
          %v2019 = vsel %vm2009, %v1992, %v2015
          %v2020 = vperm.slane %v1892, 6
          %2022 = vrot.lane.b32.xlu0 %v2020, 96
          %v2023 = vpop.permute.xlu0 %2022
          %v2025 = vsel %vm2008, %v2020, %v2023
          %v2026 = vsel %vm2009, %v2020, %v2023
          %v2027 = vmul.f32 %v2018, %v2025
          %v2028 = vmul.f32 %v2019, %v2026
          %v2029 = vsub.f32 1.0, %v2025
          %v2030 = vsub.f32 1.0, %v2026
          %v2031 = vmul.f32 %v1994, %v2029
          %v2032 = vmul.f32 %v1995, %v2030
          %v2033 = vadd.f32 %v2027, %v2031
          %v2034 = vadd.f32 %v2028, %v2032
          %v2035 = vsel %vm1976, %v2033, 0.0
          %2036 = vadd.xlane.f32.xlu0 %v2035
          %v2037 = vpop.xlane.xlu0 %2036
          %v2038 = vsel %vm1976, %v2034, 0.0
          %2039 = vadd.xlane.f32.xlu0 %v2038
          %v2040 = vpop.xlane.xlu0 %2039
          %v2041 = vrcp.pop 32.0
          %v2042 = vmul.f32 32.0, %v2041
          %v2043 = vsub.f32 1.0, %v2042
          %v2044 = vmul.f32 %v2041, %v2043
          %v2045 = vadd.f32 %v2041, %v2044
          %vm2046 = vweird.f32 %v2041
          %v2047 = vsel %vm2046, %v2041, %v2045
          %v2048 = vmul.f32 %v2037, %v2047
          %v2049 = vmul.f32 %v2040, %v2047
          %v2050 = vsub.f32 %v2033, %v2048
          %v2051 = vsub.f32 %v2034, %v2049
          %v2052 = vmul.f32 %v2050, %v2050
          %v2053 = vmul.f32 %v2051, %v2051
          %v2054 = vsel %vm1976, %v2052, 0.0
          %2055 = vadd.xlane.f32.xlu0 %v2054
          %v2056 = vpop.xlane.xlu0 %2055
          %v2057 = vsel %vm1976, %v2053, 0.0
          %2058 = vadd.xlane.f32.xlu0 %v2057
          %v2059 = vpop.xlane.xlu0 %2058
          %v2060 = vmul.f32 %v2056, %v2047
          %v2061 = vmul.f32 %v2059, %v2047
          %v2062 = vperm.slane %v1892, 2
          %2064 = vrot.lane.b32.xlu0 %v2062, 96
          %v2065 = vpop.permute.xlu0 %2064
          %v2067 = vsel %vm2008, %v2062, %v2065
          %v2068 = vsel %vm2009, %v2062, %v2065
          %v2069 = vperm.slane %v1892, 3
          %2071 = vrot.lane.b32.xlu0 %v2069, 96
          %v2072 = vpop.permute.xlu0 %2071
          %v2074 = vsel %vm2008, %v2069, %v2072
          %v2075 = vsel %vm2009, %v2069, %v2072
          %v2076 = vadd.f32 %v2060, 1e-05
          %v2077 = vadd.f32 %v2061, 1e-05
          %v2078 = vrsqrt.pop %v2076
          %v2079 = vmul.f32 %v2078, %v2076
          %v2080 = vmul.f32 %v2079, %v2078
          %v2081 = vmul.f32 0.5, %v2080
          %v2082 = vsub.f32 1.5, %v2081
          %v2083 = vmul.f32 %v2078, %v2082
          %vm2084 = vweird.f32 %v2076
          %vm2085 = vweird.f32 %v2078
          %vm2086 = vmor %vm2084, %vm2085
          %v2087 = vsel %vm2086, %v2078, %v2083
          %v2088 = vrsqrt.pop %v2077
          %v2089 = vmul.f32 %v2088, %v2077
          %v2090 = vmul.f32 %v2089, %v2088
          %v2091 = vmul.f32 0.5, %v2090
          %v2092 = vsub.f32 1.5, %v2091
          %v2093 = vmul.f32 %v2088, %v2092
          %vm2094 = vweird.f32 %v2077
          %vm2095 = vweird.f32 %v2088
          %vm2096 = vmor %vm2094, %vm2095
          %v2097 = vsel %vm2096, %v2088, %v2093
          %v2098 = vmul.f32 %v2050, %v2087
          %v2099 = vmul.f32 %v2051, %v2097
          %v2100 = vmul.f32 %v2098, %v2067
          %v2101 = vmul.f32 %v2099, %v2068
          %v2102 = vadd.f32 %v2100, %v2074
          %v2103 = vadd.f32 %v2101, %v2075
          %2104 = vst.msk [vmem:[%s391] sm:$0xff] %vm1976, %v2102
          %2105 = vst.msk [vmem:[%s391 + $0x8] sm:$0xff] %vm1976, %v2103
        $region60: #{general_conv_forward.1} parent=47 // pred_fallthru
          _
        %s2106 = sand.u32 %s246, 1
        %s2107 = scalar_lea.sflag [#allocation11], %s2106
        %s2108 = sand.u32 %s246, 1
        %s2109 = smul.addr %s2108, 16
        %s2110 = scalar_lea.vmem [#allocation10], %s2109
        // Predicated region
        $region61: #{general_conv_forward.1} parent=47 // pred_check
          %p2111 = pneg %p256
        $region62: #{general_conv_forward.1} parent=47 // pred_check_branch
          %2113 = sbr.rel (%p2111) target = $region64
        $region63: #{general_conv_forward.1} parent=47 // pred_region
          %s2114 = sld [smem:[#allocation5 + %s54]]
          %s2115 = smul.u32 2, %s2114
          %2117 = vsyncadd %s2107, 0
          %s2118 = smul.addr %s2115, 8
          %s2119 = scalar_lea.hbm %s12, %s2118
          %s2120 = sshll.u32 %s2110, 4
          %s2121 = int_to_ptr.vmem [resolvable:$true] %s2120
          %s2122 = sshll.u32 %s2119, 4
          %s2123 = int_to_ptr.hbm [resolvable:$true] %s2122
          %2128 = dma.vmem_to_hbm [thread:$0]  %s2121, 256, %s2123, %s2107, 128, 128, 8
        $region64: #{general_conv_forward.1} parent=47 // pred_fallthru
          _
      $region48: #{general_conv_forward.1} parent=5 // pred_fallthru
        _
      %p2129 = scmp.le.s32.totalorder 2, %s49
      // Predicated region
      $region65: #{general_conv_forward.1} parent=5 // pred_check
        %p2130 = pneg %p2129
      $region66: #{general_conv_forward.1} parent=5 // pred_check_branch
        %2132 = sbr.rel (%p2130) target = $region68
      $region67: #{general_conv_forward.1} parent=5 // pred_region
        %s2133 = ssub.s32 %s49, 2
        // Predicated region
        $region69: #{general_conv_forward.1} parent=67 // pred_check
          %p2134 = pneg %p262
        $region70: #{general_conv_forward.1} parent=67 // pred_check_branch
          %2136 = sbr.rel (%p2134) target = $region72
        $region71: #{general_conv_forward.1} parent=67 // pred_region
          %s2137 = sand.u32 %s247, 1
          %s2138 = scalar_lea.sflag [#allocation11], %s2137
          %s2139 = sand.u32 %s247, 1
          %s2140 = smul.addr %s2139, 16
          %s2141 = scalar_lea.vmem [#allocation10], %s2140
          %2143 = dma.done %s2138, 256
        $region72: #{general_conv_forward.1} parent=67 // pred_fallthru
          _
      $region68: #{general_conv_forward.1} parent=5 // pred_fallthru
        _
    $region6: #{general_conv_forward.1} parent=1 // loop_footer
      %s53 = sadd.s32 1, %s49
    $region7: #{general_conv_forward.1} parent=1 // loop_footer_branch
      %48 = sbr.rel target = $region3
    $region8: #{general_conv_forward.1} parent=1 // loop_exit
      _
    %2144 = vsyncpa [#allocation11], 1
    %s2145 = scalar_lea.sflag [#allocation11], 1
    %2146 = vsyncpa %s2145, 1

</llo_original>
